<compile_context>
chip_gen: v7x
topology: tpu7x:2x2x1
jax: 0.10.0
libtpu: 0.0.40
codegen_flags: <defaults>
</compile_context>

<pallas_src>
import numpy as np

import jax
import jax.numpy as jnp
from jax.experimental import pallas as pl
from jax.experimental.pallas import tpu as pltpu


# ----------------------------------------------------------------------------
# Model configuration (same synthetic SSD as before)
# ----------------------------------------------------------------------------
NUM_CLASSES = 3
IN_CHANNELS = 4
# (Cin, Cout, stride) for each backbone conv (3x3, pad=1, ReLU)
BACKBONE_CFG = [(4, 8, 1), (8, 16, 2), (16, 16, 2)]
FEATURE_INDEX = [1, 2]
# extra layers (3x3, pad=1, ReLU)
EXTRA_CFG = [(16, 16, 2)]
# anchors per detection header (backbone features 1, 2 and the extra layer)
ANCHORS = [3, 2, 3]
HEADER_IN_CH = [16, 16, 16]


def _round128(x):
    return ((x + 127) // 128) * 128


def _out_hw(h, w, stride):
    return (h + 2 - 3) // stride + 1, (w + 2 - 3) // stride + 1


def _build_plan(h, w):
    """Static execution plan mirroring SSD.forward (trace-time only)."""
    plan = []       # conv descriptors, in execution order
    scratch = []    # (name, (rows_with_guard, padded_lanes)) VMEM activations
    cur = dict(name="x", h=h, w=w, c=IN_CHANNELS)
    state = dict(row_off=0, header_idx=0, n_off=0)

    def add_conv(cin, cout, stride, kind, relu, anchors):
        nonlocal cur
        if kind == "act":
            ho, wo = _out_hw(cur["h"], cur["w"], stride)
        else:
            ho, wo = cur["h"], cur["w"]                      # 3x3/pad1/stride1
        p = dict(kind=kind, src=cur["name"], dst=None,
                 h_in=cur["h"], w_in=cur["w"], cin=cin,
                 h_out=ho, w_out=wo, cout=cout, stride=stride, relu=relu,
                 k_pad=_round128(cur["w"] * cin),            # padded matmul K
                 n_pad=_round128(wo * cout),                 # padded matmul N
                 n_off=state["n_off"], row_off=None, anchors=anchors)
        state["n_off"] += p["n_pad"]
        if kind == "act":
            dst = "a%d" % len(scratch)
            p["dst"] = dst
            scratch.append((dst, (ho + 2, p["n_pad"])))      # +2 zero guard rows
            cur = dict(name=dst, h=ho, w=wo, c=cout)
        else:
            p["row_off"] = state["row_off"]
            state["row_off"] += ho
        plan.append(p)

    for i, (cin, cout, stride) in enumerate(BACKBONE_CFG):
        add_conv(cin, cout, stride, "act", True, None)
        if i in FEATURE_INDEX:
            a = ANCHORS[state["header_idx"]]
            state["header_idx"] += 1
            add_conv(cur["c"], a * (NUM_CLASSES + 4), 1, "out", False, a)
    for (cin, cout, stride) in EXTRA_CFG:
        add_conv(cin, cout, stride, "act", True, None)
        a = ANCHORS[state["header_idx"]]
        state["header_idx"] += 1
        add_conv(cur["c"], a * (NUM_CLASSES + 4), 1, "out", False, a)

    out_rows = state["row_off"]
    out_lanes = max(p["n_pad"] for p in plan if p["kind"] == "out")
    w_total = state["n_off"]
    in_lanes = _round128(w * IN_CHANNELS)
    return plan, scratch, out_rows, out_lanes, in_lanes, w_total


# ----------------------------------------------------------------------------
# Parameters (deterministic, same structure as before) + one-time lowering
# ----------------------------------------------------------------------------
def _conv_params(key, kh, kw, cin, cout, scale=0.1):
    kw_, kb_ = jax.random.split(key)
    w = scale * jax.random.normal(kw_, (kh, kw, cin, cout), dtype=jnp.float32)
    b = scale * jax.random.normal(kb_, (cout,), dtype=jnp.float32)
    return w, b


def init_params(key):
    params = {"backbone": [], "extra": [], "cls": [], "box": []}
    for (cin, cout, _) in BACKBONE_CFG:
        key, sub = jax.random.split(key)
        params["backbone"].append(_conv_params(sub, 3, 3, cin, cout))
    for (cin, cout, _) in EXTRA_CFG:
        key, sub = jax.random.split(key)
        params["extra"].append(_conv_params(sub, 3, 3, cin, cout))
    for cin, na in zip(HEADER_IN_CH, ANCHORS):
        key, sub = jax.random.split(key)
        params["cls"].append(_conv_params(sub, 3, 3, cin, na * NUM_CLASSES))
        key, sub = jax.random.split(key)
        params["box"].append(_conv_params(sub, 3, 3, cin, na * 4))
    return params


def _lower_conv(w_hwio, b, p):
    """Lower a 3x3/pad-1/stride-s conv into 3 padded matmul weights over lanes.

    wk[kh][j*Cin + ci, wo*Cout + co] = w[kh, kw, ci, co] with j = s*wo + kw - 1;
    terms with j outside [0, W_in) hit the zero padding and are dropped.  K/N
    are zero-padded to 128-multiples (the activation's padded lanes are zero,
    so the extra rows/cols contribute nothing).
    """
    w_np = np.asarray(w_hwio, dtype=np.float32)
    b_np = np.asarray(b, dtype=np.float32)
    kh_n, kw_n, cin, cout = w_np.shape
    wk = np.zeros((kh_n, p["k_pad"], p["n_pad"]), dtype=np.float32)
    for kh in range(kh_n):
        for kw in range(kw_n):
            for wo in range(p["w_out"]):
                j = p["stride"] * wo + kw - 1
                if 0 <= j < p["w_in"]:
                    wk[kh, j * cin:(j + 1) * cin,
                       wo * cout:(wo + 1) * cout] = w_np[kh, kw]
    bl = np.zeros((1, p["n_pad"]), dtype=np.float32)
    bl[0, :p["w_out"] * cout] = np.tile(b_np, p["w_out"])
    return wk, bl


def lower_params(params, h, w):
    """One-time preprocessing: fuse each header's cls+box convs (concat on Cout),
    lower every conv to its matmul form, and pack everything into ONE bf16
    weight array (3, K, sum(N_pad)) plus ONE f32 bias array (1, sum(N_pad))."""
    plan, _, _, _, _, w_total = _build_plan(h, w)
    k_max = max(p["k_pad"] for p in plan)
    main = list(params["backbone"]) + list(params["extra"])
    w_packed = np.zeros((3, k_max, w_total), dtype=np.float32)
    b_packed = np.zeros((1, w_total), dtype=np.float32)
    mi = hi = 0
    for p in plan:
        if p["kind"] == "act":
            wgt, bias = main[mi]
            mi += 1
        else:
            wc, bc = params["cls"][hi]
            wb, bb = params["box"][hi]
            wgt = jnp.concatenate([wc, wb], axis=-1)   # cls channels first, then box
            bias = jnp.concatenate([bc, bb], axis=0)
            hi += 1
        wk, bl = _lower_conv(wgt, bias, p)
        w_packed[:, :p["k_pad"], p["n_off"]:p["n_off"] + p["n_pad"]] = wk
        b_packed[:, p["n_off"]:p["n_off"] + p["n_pad"]] = bl
    return jnp.asarray(w_packed, dtype=jnp.bfloat16), jnp.asarray(b_packed)


# ----------------------------------------------------------------------------
# The single fused Pallas kernel
# ----------------------------------------------------------------------------
def _make_kernel(plan, scratch_list, per_step, out_lanes):
    names = [name for name, _ in scratch_list]

    def kernel(x_ref, w_ref, b_ref, o_ref, *bufs):
        by_name = dict(zip(names, bufs))

        # Zero the guard rows of each activation buffer (scratch is uninitialized)
        # and the small unused lane region of the packed output block.
        for (_, (rows, lanes)), buf in zip(scratch_list, bufs):
            zrow = jnp.zeros((1, lanes), jnp.float32)
            buf[0:1, :] = zrow
            buf[rows - 1:rows, :] = zrow
        for b in range(per_step):
            for p in plan:
                if p["kind"] == "out" and p["n_pad"] < out_lanes:
                    ro, hh = p["row_off"], p["h_out"]
                    o_ref[b, ro:ro + hh, p["n_pad"]:out_lanes] = jnp.zeros(
                        (hh, out_lanes - p["n_pad"]), jnp.float32)

        for b in range(per_step):
            for p in plan:
                h_out, s = p["h_out"], p["stride"]
                k_pad, n_off, n_pad = p["k_pad"], p["n_off"], p["n_pad"]

                # Three vertical taps: plain / strided sublane slices (guard rows
                # supply the zero padding).  No selection matmuls, no iota.
                if p["src"] == "x":
                    taps = [x_ref[b, kh:kh + h_out, :] for kh in range(3)]
                else:
                    src = by_name[p["src"]]
                    if s == 1:
                        taps = [src[kh:kh + h_out, :] for kh in range(3)]
                    else:
                        taps = [src[pl.ds(kh, h_out, stride=s), :]
                                for kh in range(3)]

                acc = None
                for kh in range(3):
                    wk = w_ref[kh, 0:k_pad, n_off:n_off + n_pad]   # bf16, resident
                    part = jnp.dot(taps[kh].astype(jnp.bfloat16), wk,
                                   preferred_element_type=jnp.float32)
                    acc = part if acc is None else acc + part
                acc = acc + b_ref[:, n_off:n_off + n_pad]          # (1, n_pad) bcast
                if p["relu"]:
                    acc = jnp.maximum(acc, 0.0)

                if p["kind"] == "act":
                    # full-width, 128-aligned store into rows [1:H+1]
                    by_name[p["dst"]][1:1 + h_out, :] = acc
                else:
                    ro = p["row_off"]
                    o_ref[b, ro:ro + h_out, 0:n_pad] = acc         # 128-aligned

    return kernel


# ----------------------------------------------------------------------------
# Forward pass (is_test=False path of SSD.forward)
# ----------------------------------------------------------------------------
@jax.jit
def ssd_forward(w_packed, b_packed, x_nchw):
    """x_nchw: (N, C, H, W) -> (locations, confidences)."""
    n, c, h, w = x_nchw.shape
    plan, scratch, out_rows, out_lanes, in_lanes, _ = _build_plan(h, w)

    # Cap the grid at 2 "parallel" steps: both v7x TensorCores stay busy, while
    # single-TC v5e/v6e pay at most one extra grid-step overhead.
    n_steps = 2 if n >= 2 else 1
    per_step = -(-n // n_steps)
    n_batch_pad = n_steps * per_step

    # NCHW -> lane-dense (N, H, W*C), zero-padded to 128 lanes and with one zero
    # guard row above and below (vertical conv padding).
    x_nhwc = jnp.transpose(x_nchw, (0, 2, 3, 1)).reshape(n, h, w * c)
    x_p = jnp.zeros((n_batch_pad, h + 2, in_lanes), jnp.float32)
    x_p = x_p.at[:n, 1:h + 1, :w * c].set(x_nhwc.astype(jnp.float32))

    kernel = _make_kernel(plan, scratch, per_step, out_lanes)

    out = pl.pallas_call(
        kernel,
        out_shape=jax.ShapeDtypeStruct((n_batch_pad, out_rows, out_lanes),
                                       jnp.float32),
        grid=(n_steps,),
        in_specs=[
            pl.BlockSpec((per_step, h + 2, in_lanes), lambda i: (i, 0, 0)),
            pl.BlockSpec(w_packed.shape, lambda i: (0, 0, 0)),   # resident weights
            pl.BlockSpec(b_packed.shape, lambda i: (0, 0)),      # resident biases
        ],
        out_specs=pl.BlockSpec((per_step, out_rows, out_lanes),
                               lambda i: (i, 0, 0)),
        scratch_shapes=[pltpu.VMEM(shape, jnp.float32) for _, shape in scratch],
        compiler_params=pltpu.CompilerParams(dimension_semantics=("parallel",)),
    )(x_p, w_packed, b_packed)

    out = out[:n]

    # Decode packed header rows back to PyTorch's permute(0,2,3,1)+view layout.
    confidences, locations = [], []
    for p in plan:
        if p["kind"] != "out":
            continue
        hh, ww, a = p["h_out"], p["w_out"], p["anchors"]
        ro = p["row_off"]
        width = ww * a * (NUM_CLASSES + 4)
        blk = out[:, ro:ro + hh, :width].reshape(n, hh * ww, a * (NUM_CLASSES + 4))
        confidences.append(
            blk[..., :a * NUM_CLASSES].reshape(n, hh * ww * a, NUM_CLASSES))
        locations.append(
            blk[..., a * NUM_CLASSES:].reshape(n, hh * ww * a, 4))

    confidences = jnp.concatenate(confidences, axis=1)
    locations = jnp.concatenate(locations, axis=1)
    # TODO(synk): is_test branch (F.softmax + anchor_utils.decode with priors) not
    # exercised; training-mode forward (is_test=False) is implemented exactly.
    return locations, confidences


if __name__ == "__main__":
    key = jax.random.PRNGKey(0)
    pkey, xkey = jax.random.split(key)
    params = init_params(pkey)

    # input: (batch=2, channels=4, spatial=16x16), NCHW like PyTorch
    x = jax.random.normal(xkey, (2, 4, 16, 16), dtype=jnp.float32)

    w_packed, b_packed = lower_params(params, 16, 16)   # one-time preprocessing

    locations, confidences = ssd_forward(w_packed, b_packed, x)
    jax.block_until_ready((locations, confidences))

    # priors = 8*8*3 + 4*4*2 + 2*2*3 = 236
    assert locations.shape == (2, 236, 4), locations.shape
    assert confidences.shape == (2, 236, NUM_CLASSES), confidences.shape
    print("KERNEL_OK")
</pallas_src>

<mosaic_0001>
module attributes {stable_mosaic.version = 11 : i64} {
  func.func @kernel(%arg0: i32, %arg1: memref<1x18x128xf32, #tpu.memory_space<vmem>>, %arg2: memref<3x128x1024xbf16, #tpu.memory_space<vmem>>, %arg3: memref<1x1024xf32, #tpu.memory_space<vmem>>, %arg4: memref<1x14x256xf32, #tpu.memory_space<vmem>>, %arg5: memref<18x128xf32, #tpu.memory_space<vmem>>, %arg6: memref<10x128xf32, #tpu.memory_space<vmem>>, %arg7: memref<6x128xf32, #tpu.memory_space<vmem>>, %arg8: memref<4x128xf32, #tpu.memory_space<vmem>>) attributes {dimension_semantics = [#tpu.dimension_semantics<parallel>], iteration_bounds = array<i64: 2>, scalar_prefetch = 0 : i64, scratch_operands = 4 : i64, tpu.core_type = #tpu.core_type<tc>, window_params = [{transform_indices = @transform_0, window_bounds = array<i64: 1, 18, 128>}, {pipeline_mode = #tpu.pipeline_mode<synchronous>, transform_indices = @transform_1, window_bounds = array<i64: 3, 128, 1024>}, {pipeline_mode = #tpu.pipeline_mode<synchronous>, transform_indices = @transform_2, window_bounds = array<i64: 1, 1024>}, {transform_indices = @transform_3, window_bounds = array<i64: 1, 14, 256>}]} {
    %cst = arith.constant 0.000000e+00 : f32
    %0 = vector.broadcast %cst : f32 to vector<1x128xf32>
    %c0 = arith.constant 0 : index
    %c0_0 = arith.constant 0 : index
    %1 = vector.load %arg5[%c0, %c0_0] : memref<18x128xf32, #tpu.memory_space<vmem>>, vector<1x128xf32>
    tpu.vector_store %arg5[%c0, %c0_0], %0 {strides = array<i32>} : memref<18x128xf32, #tpu.memory_space<vmem>>, vector<1x128xf32>,
    %c17 = arith.constant 17 : index
    %c0_1 = arith.constant 0 : index
    %2 = vector.load %arg5[%c17, %c0_1] : memref<18x128xf32, #tpu.memory_space<vmem>>, vector<1x128xf32>
    tpu.vector_store %arg5[%c17, %c0_1], %0 {strides = array<i32>} : memref<18x128xf32, #tpu.memory_space<vmem>>, vector<1x128xf32>,
    %cst_2 = arith.constant 0.000000e+00 : f32
    %3 = vector.broadcast %cst_2 : f32 to vector<1x128xf32>
    %c0_3 = arith.constant 0 : index
    %c0_4 = arith.constant 0 : index
    %4 = vector.load %arg6[%c0_3, %c0_4] : memref<10x128xf32, #tpu.memory_space<vmem>>, vector<1x128xf32>
    tpu.vector_store %arg6[%c0_3, %c0_4], %3 {strides = array<i32>} : memref<10x128xf32, #tpu.memory_space<vmem>>, vector<1x128xf32>,
    %c9 = arith.constant 9 : index
    %c0_5 = arith.constant 0 : index
    %5 = vector.load %arg6[%c9, %c0_5] : memref<10x128xf32, #tpu.memory_space<vmem>>, vector<1x128xf32>
    tpu.vector_store %arg6[%c9, %c0_5], %3 {strides = array<i32>} : memref<10x128xf32, #tpu.memory_space<vmem>>, vector<1x128xf32>,
    %cst_6 = arith.constant 0.000000e+00 : f32
    %6 = vector.broadcast %cst_6 : f32 to vector<1x128xf32>
    %c0_7 = arith.constant 0 : index
    %c0_8 = arith.constant 0 : index
    %7 = vector.load %arg7[%c0_7, %c0_8] : memref<6x128xf32, #tpu.memory_space<vmem>>, vector<1x128xf32>
    tpu.vector_store %arg7[%c0_7, %c0_8], %6 {strides = array<i32>} : memref<6x128xf32, #tpu.memory_space<vmem>>, vector<1x128xf32>,
    %c5 = arith.constant 5 : index
    %c0_9 = arith.constant 0 : index
    %8 = vector.load %arg7[%c5, %c0_9] : memref<6x128xf32, #tpu.memory_space<vmem>>, vector<1x128xf32>
    tpu.vector_store %arg7[%c5, %c0_9], %6 {strides = array<i32>} : memref<6x128xf32, #tpu.memory_space<vmem>>, vector<1x128xf32>,
    %cst_10 = arith.constant 0.000000e+00 : f32
    %9 = vector.broadcast %cst_10 : f32 to vector<1x128xf32>
    %c0_11 = arith.constant 0 : index
    %c0_12 = arith.constant 0 : index
    %10 = vector.load %arg8[%c0_11, %c0_12] : memref<4x128xf32, #tpu.memory_space<vmem>>, vector<1x128xf32>
    tpu.vector_store %arg8[%c0_11, %c0_12], %9 {strides = array<i32>} : memref<4x128xf32, #tpu.memory_space<vmem>>, vector<1x128xf32>,
    %c3 = arith.constant 3 : index
    %c0_13 = arith.constant 0 : index
    %11 = vector.load %arg8[%c3, %c0_13] : memref<4x128xf32, #tpu.memory_space<vmem>>, vector<1x128xf32>
    tpu.vector_store %arg8[%c3, %c0_13], %9 {strides = array<i32>} : memref<4x128xf32, #tpu.memory_space<vmem>>, vector<1x128xf32>,
    %cst_14 = arith.constant 0.000000e+00 : f32
    %12 = vector.broadcast %cst_14 : f32 to vector<4x128xf32>
    %c0_15 = arith.constant 0 : index
    %c8 = arith.constant 8 : index
    %c128 = arith.constant 128 : index
    %13 = vector.load %arg4[%c0_15, %c8, %c128] : memref<1x14x256xf32, #tpu.memory_space<vmem>>, vector<1x4x128xf32>
    %14 = vector.shape_cast %13 : vector<1x4x128xf32> to vector<4x128xf32>
    %15 = vector.shape_cast %12 : vector<4x128xf32> to vector<1x4x128xf32>
    tpu.vector_store %arg4[%c0_15, %c8, %c128], %15 {strides = array<i32>} : memref<1x14x256xf32, #tpu.memory_space<vmem>>, vector<1x4x128xf32>,
    %cst_16 = arith.constant 0.000000e+00 : f32
    %16 = vector.broadcast %cst_16 : f32 to vector<2x128xf32>
    %c0_17 = arith.constant 0 : index
    %c12 = arith.constant 12 : index
    %c128_18 = arith.constant 128 : index
    %17 = vector.load %arg4[%c0_17, %c12, %c128_18] : memref<1x14x256xf32, #tpu.memory_space<vmem>>, vector<1x2x128xf32>
    %18 = vector.shape_cast %17 : vector<1x2x128xf32> to vector<2x128xf32>
    %19 = vector.shape_cast %16 : vector<2x128xf32> to vector<1x2x128xf32>
    tpu.vector_store %arg4[%c0_17, %c12, %c128_18], %19 {strides = array<i32>} : memref<1x14x256xf32, #tpu.memory_space<vmem>>, vector<1x2x128xf32>,
    %c0_19 = arith.constant 0 : index
    %c0_20 = arith.constant 0 : index
    %c0_21 = arith.constant 0 : index
    %20 = vector.load %arg1[%c0_19, %c0_20, %c0_21] : memref<1x18x128xf32, #tpu.memory_space<vmem>>, vector<1x16x128xf32>
    %21 = vector.shape_cast %20 : vector<1x16x128xf32> to vector<16x128xf32>
    %c0_22 = arith.constant 0 : index
    %c1 = arith.constant 1 : index
    %c0_23 = arith.constant 0 : index
    %22 = vector.load %arg1[%c0_22, %c1, %c0_23] : memref<1x18x128xf32, #tpu.memory_space<vmem>>, vector<1x16x128xf32>
    %23 = vector.shape_cast %22 : vector<1x16x128xf32> to vector<16x128xf32>
    %c0_24 = arith.constant 0 : index
    %c2 = arith.constant 2 : index
    %c0_25 = arith.constant 0 : index
    %24 = vector.load %arg1[%c0_24, %c2, %c0_25] : memref<1x18x128xf32, #tpu.memory_space<vmem>>, vector<1x16x128xf32>
    %25 = vector.shape_cast %24 : vector<1x16x128xf32> to vector<16x128xf32>
    %c0_26 = arith.constant 0 : index
    %c0_27 = arith.constant 0 : index
    %c0_28 = arith.constant 0 : index
    %26 = vector.load %arg2[%c0_26, %c0_27, %c0_28] : memref<3x128x1024xbf16, #tpu.memory_space<vmem>>, vector<1x128x128xbf16>
    %27 = vector.shape_cast %26 : vector<1x128x128xbf16> to vector<128x128xbf16>
    %28 = arith.truncf %21 : vector<16x128xf32> to vector<16x128xbf16>
    %cst_29 = arith.constant dense<0.000000e+00> : vector<16x128xf32>
    %29 = tpu.matmul %28, %27, %cst_29 {dimension_numbers = #tpu.dot_dimension_numbers<[1], [0], [0], [1], [0, 0, 1, 1], [], []>} : vector<16x128xbf16>, vector<128x128xbf16>, vector<16x128xf32> -> vector<16x128xf32>
    %c1_30 = arith.constant 1 : index
    %c0_31 = arith.constant 0 : index
    %c0_32 = arith.constant 0 : index
    %30 = vector.load %arg2[%c1_30, %c0_31, %c0_32] : memref<3x128x1024xbf16, #tpu.memory_space<vmem>>, vector<1x128x128xbf16>
    %31 = vector.shape_cast %30 : vector<1x128x128xbf16> to vector<128x128xbf16>
    %32 = arith.truncf %23 : vector<16x128xf32> to vector<16x128xbf16>
    %cst_33 = arith.constant dense<0.000000e+00> : vector<16x128xf32>
    %33 = tpu.matmul %32, %31, %cst_33 {dimension_numbers = #tpu.dot_dimension_numbers<[1], [0], [0], [1], [0, 0, 1, 1], [], []>} : vector<16x128xbf16>, vector<128x128xbf16>, vector<16x128xf32> -> vector<16x128xf32>
    %34 = arith.addf %29, %33 : vector<16x128xf32>
    %c2_34 = arith.constant 2 : index
    %c0_35 = arith.constant 0 : index
    %c0_36 = arith.constant 0 : index
    %35 = vector.load %arg2[%c2_34, %c0_35, %c0_36] : memref<3x128x1024xbf16, #tpu.memory_space<vmem>>, vector<1x128x128xbf16>
    %36 = vector.shape_cast %35 : vector<1x128x128xbf16> to vector<128x128xbf16>
    %37 = arith.truncf %25 : vector<16x128xf32> to vector<16x128xbf16>
    %cst_37 = arith.constant dense<0.000000e+00> : vector<16x128xf32>
    %38 = tpu.matmul %37, %36, %cst_37 {dimension_numbers = #tpu.dot_dimension_numbers<[1], [0], [0], [1], [0, 0, 1, 1], [], []>} : vector<16x128xbf16>, vector<128x128xbf16>, vector<16x128xf32> -> vector<16x128xf32>
    %39 = arith.addf %34, %38 : vector<16x128xf32>
    %c0_38 = arith.constant 0 : index
    %c0_39 = arith.constant 0 : index
    %40 = vector.load %arg3[%c0_38, %c0_39] : memref<1x1024xf32, #tpu.memory_space<vmem>>, vector<1x128xf32>
    %41 = vector.broadcast %40 : vector<1x128xf32> to vector<16x128xf32>
    %42 = arith.addf %39, %41 : vector<16x128xf32>
    %cst_40 = arith.constant 0.000000e+00 : f32
    %43 = vector.broadcast %cst_40 : f32 to vector<16x128xf32>
    %44 = arith.maximumf %42, %43 : vector<16x128xf32>
    %c1_41 = arith.constant 1 : index
    %c0_42 = arith.constant 0 : index
    %45 = vector.load %arg5[%c1_41, %c0_42] : memref<18x128xf32, #tpu.memory_space<vmem>>, vector<16x128xf32>
    tpu.vector_store %arg5[%c1_41, %c0_42], %44 {strides = array<i32>} : memref<18x128xf32, #tpu.memory_space<vmem>>, vector<16x128xf32>,
    %c0_43 = arith.constant 0 : index
    %c0_44 = arith.constant 0 : index
    %46 = tpu.strided_load %arg5[%c0_43, %c0_44] {strides = array<i32: 2, 1>} : memref<18x128xf32, #tpu.memory_space<vmem>>, vector<8x128xf32>
    %c1_45 = arith.constant 1 : index
    %c0_46 = arith.constant 0 : index
    %47 = tpu.strided_load %arg5[%c1_45, %c0_46] {strides = array<i32: 2, 1>} : memref<18x128xf32, #tpu.memory_space<vmem>>, vector<8x128xf32>
    %c2_47 = arith.constant 2 : index
    %c0_48 = arith.constant 0 : index
    %48 = tpu.strided_load %arg5[%c2_47, %c0_48] {strides = array<i32: 2, 1>} : memref<18x128xf32, #tpu.memory_space<vmem>>, vector<8x128xf32>
    %c0_49 = arith.constant 0 : index
    %c0_50 = arith.constant 0 : index
    %c128_51 = arith.constant 128 : index
    %49 = vector.load %arg2[%c0_49, %c0_50, %c128_51] : memref<3x128x1024xbf16, #tpu.memory_space<vmem>>, vector<1x128x128xbf16>
    %50 = vector.shape_cast %49 : vector<1x128x128xbf16> to vector<128x128xbf16>
    %51 = arith.truncf %46 : vector<8x128xf32> to vector<8x128xbf16>
    %cst_52 = arith.constant dense<0.000000e+00> : vector<8x128xf32>
    %52 = tpu.matmul %51, %50, %cst_52 {dimension_numbers = #tpu.dot_dimension_numbers<[1], [0], [0], [1], [0, 0, 1, 1], [], []>} : vector<8x128xbf16>, vector<128x128xbf16>, vector<8x128xf32> -> vector<8x128xf32>
    %c1_53 = arith.constant 1 : index
    %c0_54 = arith.constant 0 : index
    %c128_55 = arith.constant 128 : index
    %53 = vector.load %arg2[%c1_53, %c0_54, %c128_55] : memref<3x128x1024xbf16, #tpu.memory_space<vmem>>, vector<1x128x128xbf16>
    %54 = vector.shape_cast %53 : vector<1x128x128xbf16> to vector<128x128xbf16>
    %55 = arith.truncf %47 : vector<8x128xf32> to vector<8x128xbf16>
    %cst_56 = arith.constant dense<0.000000e+00> : vector<8x128xf32>
    %56 = tpu.matmul %55, %54, %cst_56 {dimension_numbers = #tpu.dot_dimension_numbers<[1], [0], [0], [1], [0, 0, 1, 1], [], []>} : vector<8x128xbf16>, vector<128x128xbf16>, vector<8x128xf32> -> vector<8x128xf32>
    %57 = arith.addf %52, %56 : vector<8x128xf32>
    %c2_57 = arith.constant 2 : index
    %c0_58 = arith.constant 0 : index
    %c128_59 = arith.constant 128 : index
    %58 = vector.load %arg2[%c2_57, %c0_58, %c128_59] : memref<3x128x1024xbf16, #tpu.memory_space<vmem>>, vector<1x128x128xbf16>
    %59 = vector.shape_cast %58 : vector<1x128x128xbf16> to vector<128x128xbf16>
    %60 = arith.truncf %48 : vector<8x128xf32> to vector<8x128xbf16>
    %cst_60 = arith.constant dense<0.000000e+00> : vector<8x128xf32>
    %61 = tpu.matmul %60, %59, %cst_60 {dimension_numbers = #tpu.dot_dimension_numbers<[1], [0], [0], [1], [0, 0, 1, 1], [], []>} : vector<8x128xbf16>, vector<128x128xbf16>, vector<8x128xf32> -> vector<8x128xf32>
    %62 = arith.addf %57, %61 : vector<8x128xf32>
    %c0_61 = arith.constant 0 : index
    %c128_62 = arith.constant 128 : index
    %63 = vector.load %arg3[%c0_61, %c128_62] : memref<1x1024xf32, #tpu.memory_space<vmem>>, vector<1x128xf32>
    %64 = vector.broadcast %63 : vector<1x128xf32> to vector<8x128xf32>
    %65 = arith.addf %62, %64 : vector<8x128xf32>
    %cst_63 = arith.constant 0.000000e+00 : f32
    %66 = vector.broadcast %cst_63 : f32 to vector<8x128xf32>
    %67 = arith.maximumf %65, %66 : vector<8x128xf32>
    %c1_64 = arith.constant 1 : index
    %c0_65 = arith.constant 0 : index
    %68 = vector.load %arg6[%c1_64, %c0_65] : memref<10x128xf32, #tpu.memory_space<vmem>>, vector<8x128xf32>
    tpu.vector_store %arg6[%c1_64, %c0_65], %67 {strides = array<i32>} : memref<10x128xf32, #tpu.memory_space<vmem>>, vector<8x128xf32>,
    %c0_66 = arith.constant 0 : index
    %c0_67 = arith.constant 0 : index
    %69 = vector.load %arg6[%c0_66, %c0_67] : memref<10x128xf32, #tpu.memory_space<vmem>>, vector<8x128xf32>
    %c1_68 = arith.constant 1 : index
    %c0_69 = arith.constant 0 : index
    %70 = vector.load %arg6[%c1_68, %c0_69] : memref<10x128xf32, #tpu.memory_space<vmem>>, vector<8x128xf32>
    %c2_70 = arith.constant 2 : index
    %c0_71 = arith.constant 0 : index
    %71 = vector.load %arg6[%c2_70, %c0_71] : memref<10x128xf32, #tpu.memory_space<vmem>>, vector<8x128xf32>
    %c0_72 = arith.constant 0 : index
    %c0_73 = arith.constant 0 : index
    %c256 = arith.constant 256 : index
    %72 = vector.load %arg2[%c0_72, %c0_73, %c256] : memref<3x128x1024xbf16, #tpu.memory_space<vmem>>, vector<1x128x256xbf16>
    %73 = vector.shape_cast %72 : vector<1x128x256xbf16> to vector<128x256xbf16>
    %74 = arith.truncf %69 : vector<8x128xf32> to vector<8x128xbf16>
    %cst_74 = arith.constant dense<0.000000e+00> : vector<8x256xf32>
    %75 = tpu.matmul %74, %73, %cst_74 {dimension_numbers = #tpu.dot_dimension_numbers<[1], [0], [0], [1], [0, 0, 1, 1], [], []>} : vector<8x128xbf16>, vector<128x256xbf16>, vector<8x256xf32> -> vector<8x256xf32>
    %c1_75 = arith.constant 1 : index
    %c0_76 = arith.constant 0 : index
    %c256_77 = arith.constant 256 : index
    %76 = vector.load %arg2[%c1_75, %c0_76, %c256_77] : memref<3x128x1024xbf16, #tpu.memory_space<vmem>>, vector<1x128x256xbf16>
    %77 = vector.shape_cast %76 : vector<1x128x256xbf16> to vector<128x256xbf16>
    %78 = arith.truncf %70 : vector<8x128xf32> to vector<8x128xbf16>
    %cst_78 = arith.constant dense<0.000000e+00> : vector<8x256xf32>
    %79 = tpu.matmul %78, %77, %cst_78 {dimension_numbers = #tpu.dot_dimension_numbers<[1], [0], [0], [1], [0, 0, 1, 1], [], []>} : vector<8x128xbf16>, vector<128x256xbf16>, vector<8x256xf32> -> vector<8x256xf32>
    %80 = arith.addf %75, %79 : vector<8x256xf32>
    %c2_79 = arith.constant 2 : index
    %c0_80 = arith.constant 0 : index
    %c256_81 = arith.constant 256 : index
    %81 = vector.load %arg2[%c2_79, %c0_80, %c256_81] : memref<3x128x1024xbf16, #tpu.memory_space<vmem>>, vector<1x128x256xbf16>
    %82 = vector.shape_cast %81 : vector<1x128x256xbf16> to vector<128x256xbf16>
    %83 = arith.truncf %71 : vector<8x128xf32> to vector<8x128xbf16>
    %cst_82 = arith.constant dense<0.000000e+00> : vector<8x256xf32>
    %84 = tpu.matmul %83, %82, %cst_82 {dimension_numbers = #tpu.dot_dimension_numbers<[1], [0], [0], [1], [0, 0, 1, 1], [], []>} : vector<8x128xbf16>, vector<128x256xbf16>, vector<8x256xf32> -> vector<8x256xf32>
    %85 = arith.addf %80, %84 : vector<8x256xf32>
    %c0_83 = arith.constant 0 : index
    %c256_84 = arith.constant 256 : index
    %86 = vector.load %arg3[%c0_83, %c256_84] : memref<1x1024xf32, #tpu.memory_space<vmem>>, vector<1x256xf32>
    %87 = vector.broadcast %86 : vector<1x256xf32> to vector<8x256xf32>
    %88 = arith.addf %85, %87 : vector<8x256xf32>
    %c0_85 = arith.constant 0 : index
    %c0_86 = arith.constant 0 : index
    %c0_87 = arith.constant 0 : index
    %89 = vector.load %arg4[%c0_85, %c0_86, %c0_87] : memref<1x14x256xf32, #tpu.memory_space<vmem>>, vector<1x8x256xf32>
    %90 = vector.shape_cast %89 : vector<1x8x256xf32> to vector<8x256xf32>
    %91 = vector.shape_cast %88 : vector<8x256xf32> to vector<1x8x256xf32>
    tpu.vector_store %arg4[%c0_85, %c0_86, %c0_87], %91 {strides = array<i32>} : memref<1x14x256xf32, #tpu.memory_space<vmem>>, vector<1x8x256xf32>,
    %c0_88 = arith.constant 0 : index
    %c0_89 = arith.constant 0 : index
    %92 = tpu.strided_load %arg6[%c0_88, %c0_89] {strides = array<i32: 2, 1>} : memref<10x128xf32, #tpu.memory_space<vmem>>, vector<4x128xf32>
    %c1_90 = arith.constant 1 : index
    %c0_91 = arith.constant 0 : index
    %93 = tpu.strided_load %arg6[%c1_90, %c0_91] {strides = array<i32: 2, 1>} : memref<10x128xf32, #tpu.memory_space<vmem>>, vector<4x128xf32>
    %c2_92 = arith.constant 2 : index
    %c0_93 = arith.constant 0 : index
    %94 = tpu.strided_load %arg6[%c2_92, %c0_93] {strides = array<i32: 2, 1>} : memref<10x128xf32, #tpu.memory_space<vmem>>, vector<4x128xf32>
    %c0_94 = arith.constant 0 : index
    %c0_95 = arith.constant 0 : index
    %c512 = arith.constant 512 : index
    %95 = vector.load %arg2[%c0_94, %c0_95, %c512] : memref<3x128x1024xbf16, #tpu.memory_space<vmem>>, vector<1x128x128xbf16>
    %96 = vector.shape_cast %95 : vector<1x128x128xbf16> to vector<128x128xbf16>
    %97 = arith.truncf %92 : vector<4x128xf32> to vector<4x128xbf16>
    %cst_96 = arith.constant dense<0.000000e+00> : vector<4x128xf32>
    %98 = tpu.matmul %97, %96, %cst_96 {dimension_numbers = #tpu.dot_dimension_numbers<[1], [0], [0], [1], [0, 0, 1, 1], [], []>} : vector<4x128xbf16>, vector<128x128xbf16>, vector<4x128xf32> -> vector<4x128xf32>
    %c1_97 = arith.constant 1 : index
    %c0_98 = arith.constant 0 : index
    %c512_99 = arith.constant 512 : index
    %99 = vector.load %arg2[%c1_97, %c0_98, %c512_99] : memref<3x128x1024xbf16, #tpu.memory_space<vmem>>, vector<1x128x128xbf16>
    %100 = vector.shape_cast %99 : vector<1x128x128xbf16> to vector<128x128xbf16>
    %101 = arith.truncf %93 : vector<4x128xf32> to vector<4x128xbf16>
    %cst_100 = arith.constant dense<0.000000e+00> : vector<4x128xf32>
    %102 = tpu.matmul %101, %100, %cst_100 {dimension_numbers = #tpu.dot_dimension_numbers<[1], [0], [0], [1], [0, 0, 1, 1], [], []>} : vector<4x128xbf16>, vector<128x128xbf16>, vector<4x128xf32> -> vector<4x128xf32>
    %103 = arith.addf %98, %102 : vector<4x128xf32>
    %c2_101 = arith.constant 2 : index
    %c0_102 = arith.constant 0 : index
    %c512_103 = arith.constant 512 : index
    %104 = vector.load %arg2[%c2_101, %c0_102, %c512_103] : memref<3x128x1024xbf16, #tpu.memory_space<vmem>>, vector<1x128x128xbf16>
    %105 = vector.shape_cast %104 : vector<1x128x128xbf16> to vector<128x128xbf16>
    %106 = arith.truncf %94 : vector<4x128xf32> to vector<4x128xbf16>
    %cst_104 = arith.constant dense<0.000000e+00> : vector<4x128xf32>
    %107 = tpu.matmul %106, %105, %cst_104 {dimension_numbers = #tpu.dot_dimension_numbers<[1], [0], [0], [1], [0, 0, 1, 1], [], []>} : vector<4x128xbf16>, vector<128x128xbf16>, vector<4x128xf32> -> vector<4x128xf32>
    %108 = arith.addf %103, %107 : vector<4x128xf32>
    %c0_105 = arith.constant 0 : index
    %c512_106 = arith.constant 512 : index
    %109 = vector.load %arg3[%c0_105, %c512_106] : memref<1x1024xf32, #tpu.memory_space<vmem>>, vector<1x128xf32>
    %110 = vector.broadcast %109 : vector<1x128xf32> to vector<4x128xf32>
    %111 = arith.addf %108, %110 : vector<4x128xf32>
    %cst_107 = arith.constant 0.000000e+00 : f32
    %112 = vector.broadcast %cst_107 : f32 to vector<4x128xf32>
    %113 = arith.maximumf %111, %112 : vector<4x128xf32>
    %c1_108 = arith.constant 1 : index
    %c0_109 = arith.constant 0 : index
    %114 = vector.load %arg7[%c1_108, %c0_109] : memref<6x128xf32, #tpu.memory_space<vmem>>, vector<4x128xf32>
    tpu.vector_store %arg7[%c1_108, %c0_109], %113 {strides = array<i32>} : memref<6x128xf32, #tpu.memory_space<vmem>>, vector<4x128xf32>,
    %c0_110 = arith.constant 0 : index
    %c0_111 = arith.constant 0 : index
    %115 = vector.load %arg7[%c0_110, %c0_111] : memref<6x128xf32, #tpu.memory_space<vmem>>, vector<4x128xf32>
    %c1_112 = arith.constant 1 : index
    %c0_113 = arith.constant 0 : index
    %116 = vector.load %arg7[%c1_112, %c0_113] : memref<6x128xf32, #tpu.memory_space<vmem>>, vector<4x128xf32>
    %c2_114 = arith.constant 2 : index
    %c0_115 = arith.constant 0 : index
    %117 = vector.load %arg7[%c2_114, %c0_115] : memref<6x128xf32, #tpu.memory_space<vmem>>, vector<4x128xf32>
    %c0_116 = arith.constant 0 : index
    %c0_117 = arith.constant 0 : index
    %c640 = arith.constant 640 : index
    %118 = vector.load %arg2[%c0_116, %c0_117, %c640] : memref<3x128x1024xbf16, #tpu.memory_space<vmem>>, vector<1x128x128xbf16>
    %119 = vector.shape_cast %118 : vector<1x128x128xbf16> to vector<128x128xbf16>
    %120 = arith.truncf %115 : vector<4x128xf32> to vector<4x128xbf16>
    %cst_118 = arith.constant dense<0.000000e+00> : vector<4x128xf32>
    %121 = tpu.matmul %120, %119, %cst_118 {dimension_numbers = #tpu.dot_dimension_numbers<[1], [0], [0], [1], [0, 0, 1, 1], [], []>} : vector<4x128xbf16>, vector<128x128xbf16>, vector<4x128xf32> -> vector<4x128xf32>
    %c1_119 = arith.constant 1 : index
    %c0_120 = arith.constant 0 : index
    %c640_121 = arith.constant 640 : index
    %122 = vector.load %arg2[%c1_119, %c0_120, %c640_121] : memref<3x128x1024xbf16, #tpu.memory_space<vmem>>, vector<1x128x128xbf16>
    %123 = vector.shape_cast %122 : vector<1x128x128xbf16> to vector<128x128xbf16>
    %124 = arith.truncf %116 : vector<4x128xf32> to vector<4x128xbf16>
    %cst_122 = arith.constant dense<0.000000e+00> : vector<4x128xf32>
    %125 = tpu.matmul %124, %123, %cst_122 {dimension_numbers = #tpu.dot_dimension_numbers<[1], [0], [0], [1], [0, 0, 1, 1], [], []>} : vector<4x128xbf16>, vector<128x128xbf16>, vector<4x128xf32> -> vector<4x128xf32>
    %126 = arith.addf %121, %125 : vector<4x128xf32>
    %c2_123 = arith.constant 2 : index
    %c0_124 = arith.constant 0 : index
    %c640_125 = arith.constant 640 : index
    %127 = vector.load %arg2[%c2_123, %c0_124, %c640_125] : memref<3x128x1024xbf16, #tpu.memory_space<vmem>>, vector<1x128x128xbf16>
    %128 = vector.shape_cast %127 : vector<1x128x128xbf16> to vector<128x128xbf16>
    %129 = arith.truncf %117 : vector<4x128xf32> to vector<4x128xbf16>
    %cst_126 = arith.constant dense<0.000000e+00> : vector<4x128xf32>
    %130 = tpu.matmul %129, %128, %cst_126 {dimension_numbers = #tpu.dot_dimension_numbers<[1], [0], [0], [1], [0, 0, 1, 1], [], []>} : vector<4x128xbf16>, vector<128x128xbf16>, vector<4x128xf32> -> vector<4x128xf32>
    %131 = arith.addf %126, %130 : vector<4x128xf32>
    %c0_127 = arith.constant 0 : index
    %c640_128 = arith.constant 640 : index
    %132 = vector.load %arg3[%c0_127, %c640_128] : memref<1x1024xf32, #tpu.memory_space<vmem>>, vector<1x128xf32>
    %133 = vector.broadcast %132 : vector<1x128xf32> to vector<4x128xf32>
    %134 = arith.addf %131, %133 : vector<4x128xf32>
    %c0_129 = arith.constant 0 : index
    %c8_130 = arith.constant 8 : index
    %c0_131 = arith.constant 0 : index
    %135 = vector.load %arg4[%c0_129, %c8_130, %c0_131] : memref<1x14x256xf32, #tpu.memory_space<vmem>>, vector<1x4x128xf32>
    %136 = vector.shape_cast %135 : vector<1x4x128xf32> to vector<4x128xf32>
    %137 = vector.shape_cast %134 : vector<4x128xf32> to vector<1x4x128xf32>
    tpu.vector_store %arg4[%c0_129, %c8_130, %c0_131], %137 {strides = array<i32>} : memref<1x14x256xf32, #tpu.memory_space<vmem>>, vector<1x4x128xf32>,
    %c0_132 = arith.constant 0 : index
    %c0_133 = arith.constant 0 : index
    %138 = tpu.strided_load %arg7[%c0_132, %c0_133] {strides = array<i32: 2, 1>} : memref<6x128xf32, #tpu.memory_space<vmem>>, vector<2x128xf32>
    %c1_134 = arith.constant 1 : index
    %c0_135 = arith.constant 0 : index
    %139 = tpu.strided_load %arg7[%c1_134, %c0_135] {strides = array<i32: 2, 1>} : memref<6x128xf32, #tpu.memory_space<vmem>>, vector<2x128xf32>
    %c2_136 = arith.constant 2 : index
    %c0_137 = arith.constant 0 : index
    %140 = tpu.strided_load %arg7[%c2_136, %c0_137] {strides = array<i32: 2, 1>} : memref<6x128xf32, #tpu.memory_space<vmem>>, vector<2x128xf32>
    %c0_138 = arith.constant 0 : index
    %c0_139 = arith.constant 0 : index
    %c768 = arith.constant 768 : index
    %141 = vector.load %arg2[%c0_138, %c0_139, %c768] : memref<3x128x1024xbf16, #tpu.memory_space<vmem>>, vector<1x128x128xbf16>
    %142 = vector.shape_cast %141 : vector<1x128x128xbf16> to vector<128x128xbf16>
    %143 = arith.truncf %138 : vector<2x128xf32> to vector<2x128xbf16>
    %cst_140 = arith.constant dense<0.000000e+00> : vector<2x128xf32>
    %144 = tpu.matmul %143, %142, %cst_140 {dimension_numbers = #tpu.dot_dimension_numbers<[1], [0], [0], [1], [0, 0, 1, 1], [], []>} : vector<2x128xbf16>, vector<128x128xbf16>, vector<2x128xf32> -> vector<2x128xf32>
    %c1_141 = arith.constant 1 : index
    %c0_142 = arith.constant 0 : index
    %c768_143 = arith.constant 768 : index
    %145 = vector.load %arg2[%c1_141, %c0_142, %c768_143] : memref<3x128x1024xbf16, #tpu.memory_space<vmem>>, vector<1x128x128xbf16>
    %146 = vector.shape_cast %145 : vector<1x128x128xbf16> to vector<128x128xbf16>
    %147 = arith.truncf %139 : vector<2x128xf32> to vector<2x128xbf16>
    %cst_144 = arith.constant dense<0.000000e+00> : vector<2x128xf32>
    %148 = tpu.matmul %147, %146, %cst_144 {dimension_numbers = #tpu.dot_dimension_numbers<[1], [0], [0], [1], [0, 0, 1, 1], [], []>} : vector<2x128xbf16>, vector<128x128xbf16>, vector<2x128xf32> -> vector<2x128xf32>
    %149 = arith.addf %144, %148 : vector<2x128xf32>
    %c2_145 = arith.constant 2 : index
    %c0_146 = arith.constant 0 : index
    %c768_147 = arith.constant 768 : index
    %150 = vector.load %arg2[%c2_145, %c0_146, %c768_147] : memref<3x128x1024xbf16, #tpu.memory_space<vmem>>, vector<1x128x128xbf16>
    %151 = vector.shape_cast %150 : vector<1x128x128xbf16> to vector<128x128xbf16>
    %152 = arith.truncf %140 : vector<2x128xf32> to vector<2x128xbf16>
    %cst_148 = arith.constant dense<0.000000e+00> : vector<2x128xf32>
    %153 = tpu.matmul %152, %151, %cst_148 {dimension_numbers = #tpu.dot_dimension_numbers<[1], [0], [0], [1], [0, 0, 1, 1], [], []>} : vector<2x128xbf16>, vector<128x128xbf16>, vector<2x128xf32> -> vector<2x128xf32>
    %154 = arith.addf %149, %153 : vector<2x128xf32>
    %c0_149 = arith.constant 0 : index
    %c768_150 = arith.constant 768 : index
    %155 = vector.load %arg3[%c0_149, %c768_150] : memref<1x1024xf32, #tpu.memory_space<vmem>>, vector<1x128xf32>
    %156 = vector.broadcast %155 : vector<1x128xf32> to vector<2x128xf32>
    %157 = arith.addf %154, %156 : vector<2x128xf32>
    %cst_151 = arith.constant 0.000000e+00 : f32
    %158 = vector.broadcast %cst_151 : f32 to vector<2x128xf32>
    %159 = arith.maximumf %157, %158 : vector<2x128xf32>
    %c1_152 = arith.constant 1 : index
    %c0_153 = arith.constant 0 : index
    %160 = vector.load %arg8[%c1_152, %c0_153] : memref<4x128xf32, #tpu.memory_space<vmem>>, vector<2x128xf32>
    tpu.vector_store %arg8[%c1_152, %c0_153], %159 {strides = array<i32>} : memref<4x128xf32, #tpu.memory_space<vmem>>, vector<2x128xf32>,
    %c0_154 = arith.constant 0 : index
    %c0_155 = arith.constant 0 : index
    %161 = vector.load %arg8[%c0_154, %c0_155] : memref<4x128xf32, #tpu.memory_space<vmem>>, vector<2x128xf32>
    %c1_156 = arith.constant 1 : index
    %c0_157 = arith.constant 0 : index
    %162 = vector.load %arg8[%c1_156, %c0_157] : memref<4x128xf32, #tpu.memory_space<vmem>>, vector<2x128xf32>
    %c2_158 = arith.constant 2 : index
    %c0_159 = arith.constant 0 : index
    %163 = vector.load %arg8[%c2_158, %c0_159] : memref<4x128xf32, #tpu.memory_space<vmem>>, vector<2x128xf32>
    %c0_160 = arith.constant 0 : index
    %c0_161 = arith.constant 0 : index
    %c896 = arith.constant 896 : index
    %164 = vector.load %arg2[%c0_160, %c0_161, %c896] : memref<3x128x1024xbf16, #tpu.memory_space<vmem>>, vector<1x128x128xbf16>
    %165 = vector.shape_cast %164 : vector<1x128x128xbf16> to vector<128x128xbf16>
    %166 = arith.truncf %161 : vector<2x128xf32> to vector<2x128xbf16>
    %cst_162 = arith.constant dense<0.000000e+00> : vector<2x128xf32>
    %167 = tpu.matmul %166, %165, %cst_162 {dimension_numbers = #tpu.dot_dimension_numbers<[1], [0], [0], [1], [0, 0, 1, 1], [], []>} : vector<2x128xbf16>, vector<128x128xbf16>, vector<2x128xf32> -> vector<2x128xf32>
    %c1_163 = arith.constant 1 : index
    %c0_164 = arith.constant 0 : index
    %c896_165 = arith.constant 896 : index
    %168 = vector.load %arg2[%c1_163, %c0_164, %c896_165] : memref<3x128x1024xbf16, #tpu.memory_space<vmem>>, vector<1x128x128xbf16>
    %169 = vector.shape_cast %168 : vector<1x128x128xbf16> to vector<128x128xbf16>
    %170 = arith.truncf %162 : vector<2x128xf32> to vector<2x128xbf16>
    %cst_166 = arith.constant dense<0.000000e+00> : vector<2x128xf32>
    %171 = tpu.matmul %170, %169, %cst_166 {dimension_numbers = #tpu.dot_dimension_numbers<[1], [0], [0], [1], [0, 0, 1, 1], [], []>} : vector<2x128xbf16>, vector<128x128xbf16>, vector<2x128xf32> -> vector<2x128xf32>
    %172 = arith.addf %167, %171 : vector<2x128xf32>
    %c2_167 = arith.constant 2 : index
    %c0_168 = arith.constant 0 : index
    %c896_169 = arith.constant 896 : index
    %173 = vector.load %arg2[%c2_167, %c0_168, %c896_169] : memref<3x128x1024xbf16, #tpu.memory_space<vmem>>, vector<1x128x128xbf16>
    %174 = vector.shape_cast %173 : vector<1x128x128xbf16> to vector<128x128xbf16>
    %175 = arith.truncf %163 : vector<2x128xf32> to vector<2x128xbf16>
    %cst_170 = arith.constant dense<0.000000e+00> : vector<2x128xf32>
    %176 = tpu.matmul %175, %174, %cst_170 {dimension_numbers = #tpu.dot_dimension_numbers<[1], [0], [0], [1], [0, 0, 1, 1], [], []>} : vector<2x128xbf16>, vector<128x128xbf16>, vector<2x128xf32> -> vector<2x128xf32>
    %177 = arith.addf %172, %176 : vector<2x128xf32>
    %c0_171 = arith.constant 0 : index
    %c896_172 = arith.constant 896 : index
    %178 = vector.load %arg3[%c0_171, %c896_172] : memref<1x1024xf32, #tpu.memory_space<vmem>>, vector<1x128xf32>
    %179 = vector.broadcast %178 : vector<1x128xf32> to vector<2x128xf32>
    %180 = arith.addf %177, %179 : vector<2x128xf32>
    %c0_173 = arith.constant 0 : index
    %c12_174 = arith.constant 12 : index
    %c0_175 = arith.constant 0 : index
    %181 = vector.load %arg4[%c0_173, %c12_174, %c0_175] : memref<1x14x256xf32, #tpu.memory_space<vmem>>, vector<1x2x128xf32>
    %182 = vector.shape_cast %181 : vector<1x2x128xf32> to vector<2x128xf32>
    %183 = vector.shape_cast %180 : vector<2x128xf32> to vector<1x2x128xf32>
    tpu.vector_store %arg4[%c0_173, %c12_174, %c0_175], %183 {strides = array<i32>} : memref<1x14x256xf32, #tpu.memory_space<vmem>>, vector<1x2x128xf32>,
    return
  }
  func.func @transform_0(%arg0: i32) -> (i32, i32, i32) {
    %c0_i32 = arith.constant 0 : i32
    %c0_i32_0 = arith.constant 0 : i32
    %c0_i32_1 = arith.constant 0 : i32
    return %arg0, %c0_i32, %c0_i32_0 : i32, i32, i32
  }
  func.func @transform_1(%arg0: i32) -> (i32, i32, i32) {
    %c0_i32 = arith.constant 0 : i32
    %c0_i32_0 = arith.constant 0 : i32
    %c0_i32_1 = arith.constant 0 : i32
    %c0_i32_2 = arith.constant 0 : i32
    return %c0_i32, %c0_i32_0, %c0_i32_1 : i32, i32, i32
  }
  func.func @transform_2(%arg0: i32) -> (i32, i32) {
    %c0_i32 = arith.constant 0 : i32
    %c0_i32_0 = arith.constant 0 : i32
    %c0_i32_1 = arith.constant 0 : i32
    return %c0_i32, %c0_i32_0 : i32, i32
  }
  func.func @transform_3(%arg0: i32) -> (i32, i32, i32) {
    %c0_i32 = arith.constant 0 : i32
    %c0_i32_0 = arith.constant 0 : i32
    %c0_i32_1 = arith.constant 0 : i32
    return %arg0, %c0_i32, %c0_i32_0 : i32, i32, i32
  }
}

</mosaic_0001>

<llo_original>
// kernel: ssd_forward.1
$region0: #{ssd_forward.1}
  #allocation0 [shape = 'u32[]', space=smem, size = 0x4, offset = 0x4, fixed_abs, tag = 'smem constant byte address 0x4 - core index']
  #allocation1 [shape = 'u32[144,128]{1,0:T(1,128)}', space=vmem, size = 0x12000, scoped, tag = 'internal scratch']
  #allocation2 [shape = 'f32[18,128]{1,0:T(8,128)}', space=vmem, size = 0x3000, scoped, tag = 'scratch operand']
  #allocation3 [shape = 'f32[10,128]{1,0:T(8,128)}', space=vmem, size = 0x2000, scoped, tag = 'scratch operand']
  #allocation4 [shape = 'f32[6,128]{1,0:T(8,128)}', space=vmem, size = 0x1000, scoped, tag = 'scratch operand']
  #allocation5 [shape = 'f32[4,128]{1,0:T(4,128)}', space=vmem, size = 0x800, scoped, tag = 'scratch operand']
  %s0 = inlined_call_operand.vmem [shape: f32[2,18,128], index: 0, kind: input, shape index: {}]
  %s1 = inlined_call_operand.hbm [shape: bf16[3,128,1024], index: 1, kind: input, shape index: {}]
  %s2 = inlined_call_operand.vmem [shape: f32[1,1024], index: 2, kind: input, shape index: {}]
  %s3 = inlined_call_operand.vmem [shape: f32[2,14,256], index: 3, kind: output, shape index: {}]
  %s4 = sld [smem:[#allocation0]]
  $region49: #{ssd_forward.1} parent=0
    _
  %s6 = ssub.s32 1, %s4
  %s7 = scalar_select 0, %s6, %s4
  $region1: #{ssd_forward.1} parent=0
    #allocation6 [shape = 'u8[786432]{0}', space=vmem, size = 0xc0000, scoped, tag = 'input window, operand 1, single buffered']
    #allocation7 [shape = 's32[2]{0}', space=sflag, size = 0x8, scoped, tag = 'scoped memory for ssd_forward.1']
    %8 = vsyncpa [#allocation7], 0
    loop: start=0, step=1, limit=4
    $region2: #{ssd_forward.1} parent=1 // loop_pre_header
      _
    $region3: #{ssd_forward.1} parent=1 // loop_header
      %s10 = sphi 0, %s14
      %p11 = scmp.ge.s32.totalorder %s10, 4
      %s20 = sphi 0, %s22
      %s23 = sphi 0, %s20
      %s24 = sphi 0, %s23
      %s40 = sphi 0, %s24
      %s44 = sphi 0, %s44
      %s46 = sphi 0, %s44
      %s47 = sphi 0, %s46
      %s61 = sphi 0, %s47
      %s65 = sphi 0, %s65
      %s67 = sphi 0, %s65
      %s68 = sphi 0, %s67
      %s82 = sphi 0, %s68
      %s88 = sphi 0, %s90
      %s91 = sphi 0, %s88
      %s92 = sphi 0, %s91
      %s108 = sphi 0, %s92
    $region4: #{ssd_forward.1} parent=1 // loop_header_branch
      %13 = sbr.rel (%p11) target = $region8
    $region5: #{ssd_forward.1} parent=1 // loop_body
      %s15 = ssub.s32 %s10, 1
      %s16 = ssub.s32 %s10, 2
      %s17 = sadd.s32 %s10, 1
      %s18 = ssub.s32 %s10, %s17
      %p19 = scmp.eq.s32.totalorder %s18, 0
      %s21 = sadd.s32 %s20, 1
      %s22 = scalar_select %p19, %s20, %s21
      %p25 = pneg %p19
      %p26 = scmp.eq.s32.totalorder %s10, 1
      %p27 = por %p25, %p26
      %p28 = scmp.ne.s32.totalorder %s20, %s23
      %p29 = scmp.eq.s32.totalorder %s10, 0
      %p30 = por %p28, %p29
      %p31 = scmp.ne.s32.totalorder %s20, %s23
      %p32 = scmp.eq.s32.totalorder %s15, 1
      %p33 = por %p31, %p32
      %p34 = scmp.ne.s32.totalorder %s23, %s24
      %p35 = scmp.eq.s32.totalorder %s15, 0
      %p36 = por %p34, %p35
      %p37 = scmp.ne.s32.totalorder %s23, %s24
      %p38 = scmp.eq.s32.totalorder %s16, 1
      %p39 = por %p37, %p38
      %p41 = scmp.ne.s32.totalorder %s24, %s40
      %p42 = scmp.eq.s32.totalorder %s16, 0
      %p43 = por %p41, %p42
      %s45 = sadd.s32 %s44, 1
      %p48 = scmp.eq.s32.totalorder %s10, 1
      %p49 = scmp.ne.s32.totalorder %s44, %s46
      %p50 = scmp.eq.s32.totalorder %s10, 0
      %p51 = por %p49, %p50
      %p52 = scmp.ne.s32.totalorder %s44, %s46
      %p53 = scmp.eq.s32.totalorder %s15, 1
      %p54 = por %p52, %p53
      %p55 = scmp.ne.s32.totalorder %s46, %s47
      %p56 = scmp.eq.s32.totalorder %s15, 0
      %p57 = por %p55, %p56
      %p58 = scmp.ne.s32.totalorder %s46, %s47
      %p59 = scmp.eq.s32.totalorder %s16, 1
      %p60 = por %p58, %p59
      %p62 = scmp.ne.s32.totalorder %s47, %s61
      %p63 = scmp.eq.s32.totalorder %s16, 0
      %p64 = por %p62, %p63
      %s66 = sadd.s32 %s65, 1
      %p69 = scmp.eq.s32.totalorder %s10, 1
      %p70 = scmp.ne.s32.totalorder %s65, %s67
      %p71 = scmp.eq.s32.totalorder %s10, 0
      %p72 = por %p70, %p71
      %p73 = scmp.ne.s32.totalorder %s65, %s67
      %p74 = scmp.eq.s32.totalorder %s15, 1
      %p75 = por %p73, %p74
      %p76 = scmp.ne.s32.totalorder %s67, %s68
      %p77 = scmp.eq.s32.totalorder %s15, 0
      %p78 = por %p76, %p77
      %p79 = scmp.ne.s32.totalorder %s67, %s68
      %p80 = scmp.eq.s32.totalorder %s16, 1
      %p81 = por %p79, %p80
      %p83 = scmp.ne.s32.totalorder %s68, %s82
      %p84 = scmp.eq.s32.totalorder %s16, 0
      %p85 = por %p83, %p84
      %s86 = ssub.s32 %s10, %s17
      %p87 = scmp.eq.s32.totalorder %s86, 0
      %s89 = sadd.s32 %s88, 1
      %s90 = scalar_select %p87, %s88, %s89
      %p93 = pneg %p87
      %p94 = scmp.eq.s32.totalorder %s10, 1
      %p95 = por %p93, %p94
      %p96 = scmp.ne.s32.totalorder %s88, %s91
      %p97 = scmp.eq.s32.totalorder %s10, 0
      %p98 = por %p96, %p97
      %p99 = scmp.ne.s32.totalorder %s88, %s91
      %p100 = scmp.eq.s32.totalorder %s15, 1
      %p101 = por %p99, %p100
      %p102 = scmp.ne.s32.totalorder %s91, %s92
      %p103 = scmp.eq.s32.totalorder %s15, 0
      %p104 = por %p102, %p103
      %p105 = scmp.ne.s32.totalorder %s91, %s92
      %p106 = scmp.eq.s32.totalorder %s16, 1
      %p107 = por %p105, %p106
      %p109 = scmp.ne.s32.totalorder %s92, %s108
      %p110 = scmp.eq.s32.totalorder %s16, 0
      %p111 = por %p109, %p110
      %p112 = scmp.le.s32.totalorder 1, %s10
      %p113 = scmp.lt.s32.totalorder %s10, 3
      %p114 = pnand %p112, %p113
      %p115 = pneg %p114
      // Predicated region
      $region9: #{ssd_forward.1} parent=5 // pred_check
        _
      $region10: #{ssd_forward.1} parent=5 // pred_check_branch
        %117 = sbr.rel (%p114) target = $region12
      $region11: #{ssd_forward.1} parent=5 // pred_region
        %s118 = ssub.s32 %s10, 1
        // Predicated region
        $region13: #{ssd_forward.1} parent=11 // pred_check
          %p119 = pneg %p57
        $region14: #{ssd_forward.1} parent=11 // pred_check_branch
          %121 = sbr.rel (%p119) target = $region16
        $region15: #{ssd_forward.1} parent=11 // pred_region
          %s123 = ssub.s32 24576, 24576
          %124 = vsyncadd [#allocation7], %s123
          %s125 = sshll.u32 [#allocation6], 4
          %s126 = int_to_ptr.vmem [resolvable:$true] %s125
          %131 = dma.hbm_to_vmem [thread:$0]  %s1, 24576, %s126, [#allocation7], 512, 512, 32
        $region16: #{ssd_forward.1} parent=11 // pred_fallthru
          _
        // Predicated region
        $region17: #{ssd_forward.1} parent=11 // pred_check
          %p132 = pneg %p78
        $region18: #{ssd_forward.1} parent=11 // pred_check_branch
          %134 = sbr.rel (%p132) target = $region20
        $region19: #{ssd_forward.1} parent=11 // pred_region
          _
        $region20: #{ssd_forward.1} parent=11 // pred_fallthru
          _
      $region12: #{ssd_forward.1} parent=5 // pred_fallthru
        _
      %p135 = scmp.lt.s32.totalorder %s10, 2
      // Predicated region
      $region21: #{ssd_forward.1} parent=5 // pred_check
        %p136 = pneg %p135
      $region22: #{ssd_forward.1} parent=5 // pred_check_branch
        %138 = sbr.rel (%p136) target = $region24
      $region23: #{ssd_forward.1} parent=5 // pred_region
        // Predicated region
        $region25: #{ssd_forward.1} parent=23 // pred_check
          %p139 = pneg %p30
        $region26: #{ssd_forward.1} parent=23 // pred_check_branch
          %141 = sbr.rel (%p139) target = $region28
        $region27: #{ssd_forward.1} parent=23 // pred_region
          %p142 = scmp.lt.s32.totalorder %s10, 1
          %s143 = scalar_select %p142, %s10, 1
          %s144 = smul.addr %s143, 3
          %s145 = smul.addr %s144, 8
          %s146 = scalar_lea.vmem %s0, %s145
        $region28: #{ssd_forward.1} parent=23 // pred_fallthru
          _
      $region24: #{ssd_forward.1} parent=5 // pred_fallthru
        _
      %p147 = scmp.le.s32.totalorder 1, %s10
      %p148 = scmp.lt.s32.totalorder %s10, 3
      %p149 = pnand %p147, %p148
      %p150 = pneg %p149
      // Predicated region
      $region29: #{ssd_forward.1} parent=5 // pred_check
        _
      $region30: #{ssd_forward.1} parent=5 // pred_check_branch
        %152 = sbr.rel (%p149) target = $region32
      $region31: #{ssd_forward.1} parent=5 // pred_region
        %s153 = ssub.s32 %s10, 1
        // Predicated region
        $region33: #{ssd_forward.1} parent=31 // pred_check
          %p154 = pneg %p57
        $region34: #{ssd_forward.1} parent=31 // pred_check_branch
          %156 = sbr.rel (%p154) target = $region36
        $region35: #{ssd_forward.1} parent=31 // pred_region
          %157 = dma.done [#allocation7], 24576
        $region36: #{ssd_forward.1} parent=31 // pred_fallthru
          _
        %p158 = scmp.lt.s32.totalorder %s15, 1
        %s159 = scalar_select %p158, %s15, 1
        %s160 = smul.addr %s159, 3
        %s161 = smul.addr %s160, 8
        %s162 = scalar_lea.vmem %s0, %s161
        %p163 = pneg %p36
        %p164 = pneg %p33
        %p165 = pneg %p57
        %p166 = pneg %p54
        %p167 = pneg %p78
        %p168 = pneg %p75
        %p169 = pneg %p104
        %p170 = pneg %p101
        %p171 = scmp.lt.s32.totalorder %s15, 1
        %s172 = scalar_select %p171, %s15, 1
        %s173 = smul.addr %s172, 4
        %s174 = smul.addr %s173, 8
        %s175 = scalar_lea.vmem %s3, %s174
        %p176 = scmp.lt.s32.totalorder %s15, 1
        %s177 = scalar_select %p176, %s15, 1
        %s178 = smul.addr %s177, 3
        %s179 = smul.addr %s178, 8
        %s180 = scalar_lea.vmem %s0, %s179
        %p181 = scmp.lt.s32.totalorder %s15, 1
        %s182 = scalar_select %p181, %s15, 1
        %s183 = smul.addr %s182, 4
        %s184 = smul.addr %s183, 8
        %s185 = scalar_lea.vmem %s3, %s184
        %187 = vst [vmem:[#allocation2] sm:$0x1] 0.0
        %188 = vst [vmem:[#allocation2 + $0x11] sm:$0x1] 0.0
        %189 = vst [vmem:[#allocation3] sm:$0x1] 0.0
        %190 = vst [vmem:[#allocation3 + $0x9] sm:$0x1] 0.0
        %191 = vst [vmem:[#allocation4] sm:$0x1] 0.0
        %192 = vst [vmem:[#allocation4 + $0x5] sm:$0x1] 0.0
        %193 = vst [vmem:[#allocation5] sm:$0x1] 0.0
        %194 = vst [vmem:[#allocation5 + $0x3] sm:$0x1] 0.0
        %195 = vst [vmem:[%s185 + $0x18] sm:$0xf] 0.0
        %196 = vst [vmem:[%s185 + $0x18] sm:$0x30] 0.0
        %v197 = vld [vmem:[%s180] sm:$0xff]
        %v198 = vld [vmem:[%s180 + $0x8] sm:$0xff]
        %v199 = vld [vmem:[%s180 + $0x1] sm:$0xff]
        %v200 = vld [vmem:[%s180 + $0x9] sm:$0xff]
        %v201 = vld [vmem:[%s180 + $0x2] sm:$0xff]
        %v202 = vld [vmem:[%s180 + $0xa] sm:$0xff]
        %v203 = vld [vmem:[#allocation6] sm:$0xf]
        %v204 = vld [vmem:[#allocation6 + $0x20] sm:$0xf]
        %v205 = vld [vmem:[#allocation6 + $0x40] sm:$0xf]
        %v206 = vld [vmem:[#allocation6 + $0x60] sm:$0xf]
        %v207 = vld [vmem:[#allocation6 + $0x80] sm:$0xf]
        %v208 = vld [vmem:[#allocation6 + $0xa0] sm:$0xf]
        %v209 = vld [vmem:[#allocation6 + $0xc0] sm:$0xf]
        %v210 = vld [vmem:[#allocation6 + $0xe0] sm:$0xf]
        %v211 = vld [vmem:[#allocation6 + $0x100] sm:$0xf]
        %v212 = vld [vmem:[#allocation6 + $0x120] sm:$0xf]
        %v213 = vld [vmem:[#allocation6 + $0x140] sm:$0xf]
        %v214 = vld [vmem:[#allocation6 + $0x160] sm:$0xf]
        %v215 = vld [vmem:[#allocation6 + $0x180] sm:$0xf]
        %v216 = vld [vmem:[#allocation6 + $0x1a0] sm:$0xf]
        %v217 = vld [vmem:[#allocation6 + $0x1c0] sm:$0xf]
        %v218 = vld [vmem:[#allocation6 + $0x1e0] sm:$0xf]
        %v219 = vpack.c.bf16 %v198, %v197
        %s220 = scalar_lea.vmem [#allocation6], 512
        %v221 = vld [vmem:[%s220] sm:$0xf]
        %v222 = vld [vmem:[%s220 + $0x20] sm:$0xf]
        %v223 = vld [vmem:[%s220 + $0x40] sm:$0xf]
        %v224 = vld [vmem:[%s220 + $0x60] sm:$0xf]
        %v225 = vld [vmem:[%s220 + $0x80] sm:$0xf]
        %v226 = vld [vmem:[%s220 + $0xa0] sm:$0xf]
        %v227 = vld [vmem:[%s220 + $0xc0] sm:$0xf]
        %v228 = vld [vmem:[%s220 + $0xe0] sm:$0xf]
        %v229 = vld [vmem:[%s220 + $0x100] sm:$0xf]
        %v230 = vld [vmem:[%s220 + $0x120] sm:$0xf]
        %v231 = vld [vmem:[%s220 + $0x140] sm:$0xf]
        %v232 = vld [vmem:[%s220 + $0x160] sm:$0xf]
        %v233 = vld [vmem:[%s220 + $0x180] sm:$0xf]
        %v234 = vld [vmem:[%s220 + $0x1a0] sm:$0xf]
        %v235 = vld [vmem:[%s220 + $0x1c0] sm:$0xf]
        %v236 = vld [vmem:[%s220 + $0x1e0] sm:$0xf]
        %v237 = vpack.c.bf16 %v200, %v199
        %v254 = vunpack.c.l.b16 %v221
        %v255 = vunpack.c.l.b16 %v222
        %v256 = vunpack.c.l.b16 %v223
        %v257 = vunpack.c.l.b16 %v224
        %v258 = vunpack.c.l.b16 %v225
        %v259 = vunpack.c.l.b16 %v226
        %v260 = vunpack.c.l.b16 %v227
        %v261 = vunpack.c.l.b16 %v228
        %v262 = vunpack.c.l.b16 %v229
        %v263 = vunpack.c.l.b16 %v230
        %v264 = vunpack.c.l.b16 %v231
        %v265 = vunpack.c.l.b16 %v232
        %v266 = vunpack.c.l.b16 %v233
        %v267 = vunpack.c.l.b16 %v234
        %v268 = vunpack.c.l.b16 %v235
        %v269 = vunpack.c.l.b16 %v236
        %v270 = vpack.c.b16 %v255, %v254
        %v271 = vpack.c.b16 %v257, %v256
        %v272 = vpack.c.b16 %v259, %v258
        %v273 = vpack.c.b16 %v261, %v260
        %v274 = vpack.c.b16 %v263, %v262
        %v275 = vpack.c.b16 %v265, %v264
        %v276 = vpack.c.b16 %v267, %v266
        %v277 = vpack.c.b16 %v269, %v268
        %286 = vmatprep.subr.bf16.mxu0 0
        %287 = vmatpush1.bf16.msra.mxu0 %v270
        %288 = vmatprep.subr.bf16.mxu0 0
        %289 = vmatpush1.bf16.msra.mxu0 %v271
        %290 = vmatprep.subr.bf16.mxu0 0
        %291 = vmatpush1.bf16.msra.mxu0 %v272
        %292 = vmatprep.subr.bf16.mxu0 0
        %293 = vmatpush1.bf16.msra.mxu0 %v273
        %294 = vmatprep.subr.bf16.mxu0 0
        %295 = vmatpush1.bf16.msra.mxu0 %v274
        %296 = vmatprep.subr.bf16.mxu0 0
        %297 = vmatpush1.bf16.msra.mxu0 %v275
        %298 = vmatprep.subr.bf16.mxu0 0
        %299 = vmatpush1.bf16.msra.mxu0 %v276
        %300 = vmatprep.subr.bf16.mxu0 0
        %301 = vmatpush1.bf16.msra.mxu0 %v277
        %302 = vmatprep.subr.bf16.mxu0 0
        %303 = vmatpush1.bf16.msra.mxu0 0
        %304 = vmatprep.subr.bf16.mxu0 0
        %305 = vmatpush1.bf16.msra.mxu0 0
        %306 = vmatprep.subr.bf16.mxu0 0
        %307 = vmatpush1.bf16.msra.mxu0 0
        %308 = vmatprep.subr.bf16.mxu0 0
        %309 = vmatpush1.bf16.msra.mxu0 0
        %310 = vmatprep.subr.bf16.mxu0 0
        %311 = vmatpush1.bf16.msra.mxu0 0
        %312 = vmatprep.subr.bf16.mxu0 0
        %313 = vmatpush1.bf16.msra.mxu0 0
        %314 = vmatprep.subr.bf16.mxu0 0
        %315 = vmatpush1.bf16.msra.mxu0 0
        %316 = vmatprep.subr.bf16.mxu0 0
        %317 = vmatpush1.bf16.msra.mxu0 0
        %318 = vmatprep.mubr.bf16.mxu0 0
        %319 = vmatmul.mubr.bf16.gmra.mrb[0].mxu0 %v237
        %v320 = vpop.f32.mrb[0].mxu0
        %v321 = vadd.f32 0.0, %v320
        %v322 = vpop.f32.mrb[0].mxu0
        %v323 = vpop.f32.mrb[0].mxu0
        %v324 = vadd.f32 0.0, %v323
        %v325 = vpop.f32.mrb[0].mxu0
        %326 = vdwg.mxu0
        %v343 = vunpack.c.l.b16 %v203
        %v344 = vunpack.c.l.b16 %v204
        %v345 = vunpack.c.l.b16 %v205
        %v346 = vunpack.c.l.b16 %v206
        %v347 = vunpack.c.l.b16 %v207
        %v348 = vunpack.c.l.b16 %v208
        %v349 = vunpack.c.l.b16 %v209
        %v350 = vunpack.c.l.b16 %v210
        %v351 = vunpack.c.l.b16 %v211
        %v352 = vunpack.c.l.b16 %v212
        %v353 = vunpack.c.l.b16 %v213
        %v354 = vunpack.c.l.b16 %v214
        %v355 = vunpack.c.l.b16 %v215
        %v356 = vunpack.c.l.b16 %v216
        %v357 = vunpack.c.l.b16 %v217
        %v358 = vunpack.c.l.b16 %v218
        %v359 = vpack.c.b16 %v344, %v343
        %v360 = vpack.c.b16 %v346, %v345
        %v361 = vpack.c.b16 %v348, %v347
        %v362 = vpack.c.b16 %v350, %v349
        %v363 = vpack.c.b16 %v352, %v351
        %v364 = vpack.c.b16 %v354, %v353
        %v365 = vpack.c.b16 %v356, %v355
        %v366 = vpack.c.b16 %v358, %v357
        %375 = vmatprep.subr.bf16.mxu0 0
        %376 = vmatpush1.bf16.msra.mxu0 %v359
        %377 = vmatprep.subr.bf16.mxu0 0
        %378 = vmatpush1.bf16.msra.mxu0 %v360
        %379 = vmatprep.subr.bf16.mxu0 0
        %380 = vmatpush1.bf16.msra.mxu0 %v361
        %381 = vmatprep.subr.bf16.mxu0 0
        %382 = vmatpush1.bf16.msra.mxu0 %v362
        %383 = vmatprep.subr.bf16.mxu0 0
        %384 = vmatpush1.bf16.msra.mxu0 %v363
        %385 = vmatprep.subr.bf16.mxu0 0
        %386 = vmatpush1.bf16.msra.mxu0 %v364
        %387 = vmatprep.subr.bf16.mxu0 0
        %388 = vmatpush1.bf16.msra.mxu0 %v365
        %389 = vmatprep.subr.bf16.mxu0 0
        %390 = vmatpush1.bf16.msra.mxu0 %v366
        %391 = vmatprep.subr.bf16.mxu0 0
        %392 = vmatpush1.bf16.msra.mxu0 0
        %393 = vmatprep.subr.bf16.mxu0 0
        %394 = vmatpush1.bf16.msra.mxu0 0
        %395 = vmatprep.subr.bf16.mxu0 0
        %396 = vmatpush1.bf16.msra.mxu0 0
        %397 = vmatprep.subr.bf16.mxu0 0
        %398 = vmatpush1.bf16.msra.mxu0 0
        %399 = vmatprep.subr.bf16.mxu0 0
        %400 = vmatpush1.bf16.msra.mxu0 0
        %401 = vmatprep.subr.bf16.mxu0 0
        %402 = vmatpush1.bf16.msra.mxu0 0
        %403 = vmatprep.subr.bf16.mxu0 0
        %404 = vmatpush1.bf16.msra.mxu0 0
        %405 = vmatprep.subr.bf16.mxu0 0
        %406 = vmatpush1.bf16.msra.mxu0 0
        %407 = vmatprep.mubr.bf16.mxu0 0
        %408 = vmatmul.mubr.bf16.gmra.mrb[0].mxu0 %v219
        %v409 = vpop.f32.mrb[0].mxu0
        %v410 = vadd.f32 %v321, %v409
        %v411 = vpop.f32.mrb[0].mxu0
        %v412 = vpop.f32.mrb[0].mxu0
        %v413 = vadd.f32 %v324, %v412
        %v414 = vpop.f32.mrb[0].mxu0
        %415 = vdwg.mxu0
        %s416 = scalar_lea.vmem [#allocation6], 1024
        %v417 = vld [vmem:[%s416] sm:$0xf]
        %v418 = vld [vmem:[%s416 + $0x20] sm:$0xf]
        %v419 = vld [vmem:[%s416 + $0x40] sm:$0xf]
        %v420 = vld [vmem:[%s416 + $0x60] sm:$0xf]
        %v421 = vld [vmem:[%s416 + $0x80] sm:$0xf]
        %v422 = vld [vmem:[%s416 + $0xa0] sm:$0xf]
        %v423 = vld [vmem:[%s416 + $0xc0] sm:$0xf]
        %v424 = vld [vmem:[%s416 + $0xe0] sm:$0xf]
        %v425 = vld [vmem:[%s416 + $0x100] sm:$0xf]
        %v426 = vld [vmem:[%s416 + $0x120] sm:$0xf]
        %v427 = vld [vmem:[%s416 + $0x140] sm:$0xf]
        %v428 = vld [vmem:[%s416 + $0x160] sm:$0xf]
        %v429 = vld [vmem:[%s416 + $0x180] sm:$0xf]
        %v430 = vld [vmem:[%s416 + $0x1a0] sm:$0xf]
        %v431 = vld [vmem:[%s416 + $0x1c0] sm:$0xf]
        %v432 = vld [vmem:[%s416 + $0x1e0] sm:$0xf]
        %v433 = vpack.c.bf16 %v202, %v201
        %v450 = vunpack.c.l.b16 %v417
        %v451 = vunpack.c.l.b16 %v418
        %v452 = vunpack.c.l.b16 %v419
        %v453 = vunpack.c.l.b16 %v420
        %v454 = vunpack.c.l.b16 %v421
        %v455 = vunpack.c.l.b16 %v422
        %v456 = vunpack.c.l.b16 %v423
        %v457 = vunpack.c.l.b16 %v424
        %v458 = vunpack.c.l.b16 %v425
        %v459 = vunpack.c.l.b16 %v426
        %v460 = vunpack.c.l.b16 %v427
        %v461 = vunpack.c.l.b16 %v428
        %v462 = vunpack.c.l.b16 %v429
        %v463 = vunpack.c.l.b16 %v430
        %v464 = vunpack.c.l.b16 %v431
        %v465 = vunpack.c.l.b16 %v432
        %v466 = vpack.c.b16 %v451, %v450
        %v467 = vpack.c.b16 %v453, %v452
        %v468 = vpack.c.b16 %v455, %v454
        %v469 = vpack.c.b16 %v457, %v456
        %v470 = vpack.c.b16 %v459, %v458
        %v471 = vpack.c.b16 %v461, %v460
        %v472 = vpack.c.b16 %v463, %v462
        %v473 = vpack.c.b16 %v465, %v464
        %482 = vmatprep.subr.bf16.mxu0 0
        %483 = vmatpush1.bf16.msra.mxu0 %v466
        %484 = vmatprep.subr.bf16.mxu0 0
        %485 = vmatpush1.bf16.msra.mxu0 %v467
        %486 = vmatprep.subr.bf16.mxu0 0
        %487 = vmatpush1.bf16.msra.mxu0 %v468
        %488 = vmatprep.subr.bf16.mxu0 0
        %489 = vmatpush1.bf16.msra.mxu0 %v469
        %490 = vmatprep.subr.bf16.mxu0 0
        %491 = vmatpush1.bf16.msra.mxu0 %v470
        %492 = vmatprep.subr.bf16.mxu0 0
        %493 = vmatpush1.bf16.msra.mxu0 %v471
        %494 = vmatprep.subr.bf16.mxu0 0
        %495 = vmatpush1.bf16.msra.mxu0 %v472
        %496 = vmatprep.subr.bf16.mxu0 0
        %497 = vmatpush1.bf16.msra.mxu0 %v473
        %498 = vmatprep.subr.bf16.mxu0 0
        %499 = vmatpush1.bf16.msra.mxu0 0
        %500 = vmatprep.subr.bf16.mxu0 0
        %501 = vmatpush1.bf16.msra.mxu0 0
        %502 = vmatprep.subr.bf16.mxu0 0
        %503 = vmatpush1.bf16.msra.mxu0 0
        %504 = vmatprep.subr.bf16.mxu0 0
        %505 = vmatpush1.bf16.msra.mxu0 0
        %506 = vmatprep.subr.bf16.mxu0 0
        %507 = vmatpush1.bf16.msra.mxu0 0
        %508 = vmatprep.subr.bf16.mxu0 0
        %509 = vmatpush1.bf16.msra.mxu0 0
        %510 = vmatprep.subr.bf16.mxu0 0
        %511 = vmatpush1.bf16.msra.mxu0 0
        %512 = vmatprep.subr.bf16.mxu0 0
        %513 = vmatpush1.bf16.msra.mxu0 0
        %514 = vmatprep.mubr.bf16.mxu0 0
        %515 = vmatmul.mubr.bf16.gmra.mrb[0].mxu0 %v433
        %v516 = vpop.f32.mrb[0].mxu0
        %v517 = vadd.f32 0.0, %v516
        %v518 = vpop.f32.mrb[0].mxu0
        %v519 = vpop.f32.mrb[0].mxu0
        %v520 = vadd.f32 0.0, %v519
        %v521 = vpop.f32.mrb[0].mxu0
        %522 = vdwg.mxu0
        %v523 = vadd.f32 %v410, %v517
        %v524 = vadd.f32 %v413, %v520
        %v525 = vld [vmem:[%s2] sm:$0x1]
        %v527 = vlaneseq
        %v528 = vshrl.u32 %v527, 7
        %v529 = vsub.s32 0, %v528
        %v530 = vrot.slane %v525, %v529
        %v532 = vadd.f32 %v523, %v530
        %v533 = vadd.f32 %v524, %v530
        %v534 = vmax.f32 %v532, 0.0
        %v535 = vmax.f32 %v533, 0.0
        %536 = vst [vmem:[#allocation2 + $0x1] sm:$0xff] %v534
        %537 = vst [vmem:[#allocation2 + $0x9] sm:$0xff] %v535
        %v538 = vld [vmem:[#allocation2] ss:$2 sm:$0xff]
        %s539 = scalar_lea.vmem [#allocation2], 1
        %v540 = vld [vmem:[%s539] ss:$2 sm:$0xff]
        %s541 = scalar_lea.vmem [#allocation2], 2
        %v542 = vld [vmem:[%s541] ss:$2 sm:$0xff]
        %v543 = vld [vmem:[#allocation6 + $0x4] sm:$0xf]
        %v544 = vld [vmem:[#allocation6 + $0x24] sm:$0xf]
        %v545 = vld [vmem:[#allocation6 + $0x44] sm:$0xf]
        %v546 = vld [vmem:[#allocation6 + $0x64] sm:$0xf]
        %v547 = vld [vmem:[#allocation6 + $0x84] sm:$0xf]
        %v548 = vld [vmem:[#allocation6 + $0xa4] sm:$0xf]
        %v549 = vld [vmem:[#allocation6 + $0xc4] sm:$0xf]
        %v550 = vld [vmem:[#allocation6 + $0xe4] sm:$0xf]
        %v551 = vld [vmem:[#allocation6 + $0x104] sm:$0xf]
        %v552 = vld [vmem:[#allocation6 + $0x124] sm:$0xf]
        %v553 = vld [vmem:[#allocation6 + $0x144] sm:$0xf]
        %v554 = vld [vmem:[#allocation6 + $0x164] sm:$0xf]
        %v555 = vld [vmem:[#allocation6 + $0x184] sm:$0xf]
        %v556 = vld [vmem:[#allocation6 + $0x1a4] sm:$0xf]
        %v557 = vld [vmem:[#allocation6 + $0x1c4] sm:$0xf]
        %v558 = vld [vmem:[#allocation6 + $0x1e4] sm:$0xf]
        %v559 = vpack.c.bf16 %v538, %v538
        %v560 = vld [vmem:[%s220 + $0x4] sm:$0xf]
        %v561 = vld [vmem:[%s220 + $0x24] sm:$0xf]
        %v562 = vld [vmem:[%s220 + $0x44] sm:$0xf]
        %v563 = vld [vmem:[%s220 + $0x64] sm:$0xf]
        %v564 = vld [vmem:[%s220 + $0x84] sm:$0xf]
        %v565 = vld [vmem:[%s220 + $0xa4] sm:$0xf]
        %v566 = vld [vmem:[%s220 + $0xc4] sm:$0xf]
        %v567 = vld [vmem:[%s220 + $0xe4] sm:$0xf]
        %v568 = vld [vmem:[%s220 + $0x104] sm:$0xf]
        %v569 = vld [vmem:[%s220 + $0x124] sm:$0xf]
        %v570 = vld [vmem:[%s220 + $0x144] sm:$0xf]
        %v571 = vld [vmem:[%s220 + $0x164] sm:$0xf]
        %v572 = vld [vmem:[%s220 + $0x184] sm:$0xf]
        %v573 = vld [vmem:[%s220 + $0x1a4] sm:$0xf]
        %v574 = vld [vmem:[%s220 + $0x1c4] sm:$0xf]
        %v575 = vld [vmem:[%s220 + $0x1e4] sm:$0xf]
        %v576 = vpack.c.bf16 %v540, %v540
        %v593 = vunpack.c.l.b16 %v560
        %v594 = vunpack.c.l.b16 %v561
        %v595 = vunpack.c.l.b16 %v562
        %v596 = vunpack.c.l.b16 %v563
        %v597 = vunpack.c.l.b16 %v564
        %v598 = vunpack.c.l.b16 %v565
        %v599 = vunpack.c.l.b16 %v566
        %v600 = vunpack.c.l.b16 %v567
        %v601 = vunpack.c.l.b16 %v568
        %v602 = vunpack.c.l.b16 %v569
        %v603 = vunpack.c.l.b16 %v570
        %v604 = vunpack.c.l.b16 %v571
        %v605 = vunpack.c.l.b16 %v572
        %v606 = vunpack.c.l.b16 %v573
        %v607 = vunpack.c.l.b16 %v574
        %v608 = vunpack.c.l.b16 %v575
        %v609 = vpack.c.b16 %v594, %v593
        %v610 = vpack.c.b16 %v596, %v595
        %v611 = vpack.c.b16 %v598, %v597
        %v612 = vpack.c.b16 %v600, %v599
        %v613 = vpack.c.b16 %v602, %v601
        %v614 = vpack.c.b16 %v604, %v603
        %v615 = vpack.c.b16 %v606, %v605
        %v616 = vpack.c.b16 %v608, %v607
        %625 = vmatprep.subr.bf16.mxu0 0
        %626 = vmatpush1.bf16.msra.mxu0 %v609
        %627 = vmatprep.subr.bf16.mxu0 0
        %628 = vmatpush1.bf16.msra.mxu0 %v610
        %629 = vmatprep.subr.bf16.mxu0 0
        %630 = vmatpush1.bf16.msra.mxu0 %v611
        %631 = vmatprep.subr.bf16.mxu0 0
        %632 = vmatpush1.bf16.msra.mxu0 %v612
        %633 = vmatprep.subr.bf16.mxu0 0
        %634 = vmatpush1.bf16.msra.mxu0 %v613
        %635 = vmatprep.subr.bf16.mxu0 0
        %636 = vmatpush1.bf16.msra.mxu0 %v614
        %637 = vmatprep.subr.bf16.mxu0 0
        %638 = vmatpush1.bf16.msra.mxu0 %v615
        %639 = vmatprep.subr.bf16.mxu0 0
        %640 = vmatpush1.bf16.msra.mxu0 %v616
        %641 = vmatprep.subr.bf16.mxu0 0
        %642 = vmatpush1.bf16.msra.mxu0 0
        %643 = vmatprep.subr.bf16.mxu0 0
        %644 = vmatpush1.bf16.msra.mxu0 0
        %645 = vmatprep.subr.bf16.mxu0 0
        %646 = vmatpush1.bf16.msra.mxu0 0
        %647 = vmatprep.subr.bf16.mxu0 0
        %648 = vmatpush1.bf16.msra.mxu0 0
        %649 = vmatprep.subr.bf16.mxu0 0
        %650 = vmatpush1.bf16.msra.mxu0 0
        %651 = vmatprep.subr.bf16.mxu0 0
        %652 = vmatpush1.bf16.msra.mxu0 0
        %653 = vmatprep.subr.bf16.mxu0 0
        %654 = vmatpush1.bf16.msra.mxu0 0
        %655 = vmatprep.subr.bf16.mxu0 0
        %656 = vmatpush1.bf16.msra.mxu0 0
        %657 = vmatprep.mubr.bf16.mxu0 0
        %658 = vmatmul.mubr.bf16.gmra.mrb[0].mxu0 %v576
        %v659 = vpop.f32.mrb[0].mxu0
        %v660 = vadd.f32 0.0, %v659
        %v661 = vpop.f32.mrb[0].mxu0
        %v662 = vpop.f32.mrb[0].mxu0
        %v663 = vpop.f32.mrb[0].mxu0
        %664 = vdwg.mxu0
        %v681 = vunpack.c.l.b16 %v543
        %v682 = vunpack.c.l.b16 %v544
        %v683 = vunpack.c.l.b16 %v545
        %v684 = vunpack.c.l.b16 %v546
        %v685 = vunpack.c.l.b16 %v547
        %v686 = vunpack.c.l.b16 %v548
        %v687 = vunpack.c.l.b16 %v549
        %v688 = vunpack.c.l.b16 %v550
        %v689 = vunpack.c.l.b16 %v551
        %v690 = vunpack.c.l.b16 %v552
        %v691 = vunpack.c.l.b16 %v553
        %v692 = vunpack.c.l.b16 %v554
        %v693 = vunpack.c.l.b16 %v555
        %v694 = vunpack.c.l.b16 %v556
        %v695 = vunpack.c.l.b16 %v557
        %v696 = vunpack.c.l.b16 %v558
        %v697 = vpack.c.b16 %v682, %v681
        %v698 = vpack.c.b16 %v684, %v683
        %v699 = vpack.c.b16 %v686, %v685
        %v700 = vpack.c.b16 %v688, %v687
        %v701 = vpack.c.b16 %v690, %v689
        %v702 = vpack.c.b16 %v692, %v691
        %v703 = vpack.c.b16 %v694, %v693
        %v704 = vpack.c.b16 %v696, %v695
        %713 = vmatprep.subr.bf16.mxu0 0
        %714 = vmatpush1.bf16.msra.mxu0 %v697
        %715 = vmatprep.subr.bf16.mxu0 0
        %716 = vmatpush1.bf16.msra.mxu0 %v698
        %717 = vmatprep.subr.bf16.mxu0 0
        %718 = vmatpush1.bf16.msra.mxu0 %v699
        %719 = vmatprep.subr.bf16.mxu0 0
        %720 = vmatpush1.bf16.msra.mxu0 %v700
        %721 = vmatprep.subr.bf16.mxu0 0
        %722 = vmatpush1.bf16.msra.mxu0 %v701
        %723 = vmatprep.subr.bf16.mxu0 0
        %724 = vmatpush1.bf16.msra.mxu0 %v702
        %725 = vmatprep.subr.bf16.mxu0 0
        %726 = vmatpush1.bf16.msra.mxu0 %v703
        %727 = vmatprep.subr.bf16.mxu0 0
        %728 = vmatpush1.bf16.msra.mxu0 %v704
        %729 = vmatprep.subr.bf16.mxu0 0
        %730 = vmatpush1.bf16.msra.mxu0 0
        %731 = vmatprep.subr.bf16.mxu0 0
        %732 = vmatpush1.bf16.msra.mxu0 0
        %733 = vmatprep.subr.bf16.mxu0 0
        %734 = vmatpush1.bf16.msra.mxu0 0
        %735 = vmatprep.subr.bf16.mxu0 0
        %736 = vmatpush1.bf16.msra.mxu0 0
        %737 = vmatprep.subr.bf16.mxu0 0
        %738 = vmatpush1.bf16.msra.mxu0 0
        %739 = vmatprep.subr.bf16.mxu0 0
        %740 = vmatpush1.bf16.msra.mxu0 0
        %741 = vmatprep.subr.bf16.mxu0 0
        %742 = vmatpush1.bf16.msra.mxu0 0
        %743 = vmatprep.subr.bf16.mxu0 0
        %744 = vmatpush1.bf16.msra.mxu0 0
        %745 = vmatprep.mubr.bf16.mxu0 0
        %746 = vmatmul.mubr.bf16.gmra.mrb[0].mxu0 %v559
        %v747 = vpop.f32.mrb[0].mxu0
        %v748 = vadd.f32 %v660, %v747
        %v749 = vpop.f32.mrb[0].mxu0
        %v750 = vpop.f32.mrb[0].mxu0
        %v751 = vpop.f32.mrb[0].mxu0
        %752 = vdwg.mxu0
        %v753 = vld [vmem:[%s416 + $0x4] sm:$0xf]
        %v754 = vld [vmem:[%s416 + $0x24] sm:$0xf]
        %v755 = vld [vmem:[%s416 + $0x44] sm:$0xf]
        %v756 = vld [vmem:[%s416 + $0x64] sm:$0xf]
        %v757 = vld [vmem:[%s416 + $0x84] sm:$0xf]
        %v758 = vld [vmem:[%s416 + $0xa4] sm:$0xf]
        %v759 = vld [vmem:[%s416 + $0xc4] sm:$0xf]
        %v760 = vld [vmem:[%s416 + $0xe4] sm:$0xf]
        %v761 = vld [vmem:[%s416 + $0x104] sm:$0xf]
        %v762 = vld [vmem:[%s416 + $0x124] sm:$0xf]
        %v763 = vld [vmem:[%s416 + $0x144] sm:$0xf]
        %v764 = vld [vmem:[%s416 + $0x164] sm:$0xf]
        %v765 = vld [vmem:[%s416 + $0x184] sm:$0xf]
        %v766 = vld [vmem:[%s416 + $0x1a4] sm:$0xf]
        %v767 = vld [vmem:[%s416 + $0x1c4] sm:$0xf]
        %v768 = vld [vmem:[%s416 + $0x1e4] sm:$0xf]
        %v769 = vpack.c.bf16 %v542, %v542
        %v786 = vunpack.c.l.b16 %v753
        %v787 = vunpack.c.l.b16 %v754
        %v788 = vunpack.c.l.b16 %v755
        %v789 = vunpack.c.l.b16 %v756
        %v790 = vunpack.c.l.b16 %v757
        %v791 = vunpack.c.l.b16 %v758
        %v792 = vunpack.c.l.b16 %v759
        %v793 = vunpack.c.l.b16 %v760
        %v794 = vunpack.c.l.b16 %v761
        %v795 = vunpack.c.l.b16 %v762
        %v796 = vunpack.c.l.b16 %v763
        %v797 = vunpack.c.l.b16 %v764
        %v798 = vunpack.c.l.b16 %v765
        %v799 = vunpack.c.l.b16 %v766
        %v800 = vunpack.c.l.b16 %v767
        %v801 = vunpack.c.l.b16 %v768
        %v802 = vpack.c.b16 %v787, %v786
        %v803 = vpack.c.b16 %v789, %v788
        %v804 = vpack.c.b16 %v791, %v790
        %v805 = vpack.c.b16 %v793, %v792
        %v806 = vpack.c.b16 %v795, %v794
        %v807 = vpack.c.b16 %v797, %v796
        %v808 = vpack.c.b16 %v799, %v798
        %v809 = vpack.c.b16 %v801, %v800
        %818 = vmatprep.subr.bf16.mxu0 0
        %819 = vmatpush1.bf16.msra.mxu0 %v802
        %820 = vmatprep.subr.bf16.mxu0 0
        %821 = vmatpush1.bf16.msra.mxu0 %v803
        %822 = vmatprep.subr.bf16.mxu0 0
        %823 = vmatpush1.bf16.msra.mxu0 %v804
        %824 = vmatprep.subr.bf16.mxu0 0
        %825 = vmatpush1.bf16.msra.mxu0 %v805
        %826 = vmatprep.subr.bf16.mxu0 0
        %827 = vmatpush1.bf16.msra.mxu0 %v806
        %828 = vmatprep.subr.bf16.mxu0 0
        %829 = vmatpush1.bf16.msra.mxu0 %v807
        %830 = vmatprep.subr.bf16.mxu0 0
        %831 = vmatpush1.bf16.msra.mxu0 %v808
        %832 = vmatprep.subr.bf16.mxu0 0
        %833 = vmatpush1.bf16.msra.mxu0 %v809
        %834 = vmatprep.subr.bf16.mxu0 0
        %835 = vmatpush1.bf16.msra.mxu0 0
        %836 = vmatprep.subr.bf16.mxu0 0
        %837 = vmatpush1.bf16.msra.mxu0 0
        %838 = vmatprep.subr.bf16.mxu0 0
        %839 = vmatpush1.bf16.msra.mxu0 0
        %840 = vmatprep.subr.bf16.mxu0 0
        %841 = vmatpush1.bf16.msra.mxu0 0
        %842 = vmatprep.subr.bf16.mxu0 0
        %843 = vmatpush1.bf16.msra.mxu0 0
        %844 = vmatprep.subr.bf16.mxu0 0
        %845 = vmatpush1.bf16.msra.mxu0 0
        %846 = vmatprep.subr.bf16.mxu0 0
        %847 = vmatpush1.bf16.msra.mxu0 0
        %848 = vmatprep.subr.bf16.mxu0 0
        %849 = vmatpush1.bf16.msra.mxu0 0
        %850 = vmatprep.mubr.bf16.mxu0 0
        %851 = vmatmul.mubr.bf16.gmra.mrb[0].mxu0 %v769
        %v852 = vpop.f32.mrb[0].mxu0
        %v853 = vadd.f32 0.0, %v852
        %v854 = vpop.f32.mrb[0].mxu0
        %v855 = vpop.f32.mrb[0].mxu0
        %v856 = vpop.f32.mrb[0].mxu0
        %857 = vdwg.mxu0
        %v858 = vadd.f32 %v748, %v853
        %v859 = vld [vmem:[%s2 + $0x1] sm:$0x1]
        %v861 = vlaneseq
        %v862 = vshrl.u32 %v861, 7
        %v863 = vsub.s32 0, %v862
        %v864 = vrot.slane %v859, %v863
        %v866 = vadd.f32 %v858, %v864
        %v867 = vmax.f32 %v866, 0.0
        %868 = vst [vmem:[#allocation3 + $0x1] sm:$0xff] %v867
        %v869 = vld [vmem:[#allocation3] sm:$0xff]
        %v870 = vld [vmem:[#allocation3 + $0x1] sm:$0xff]
        %v871 = vld [vmem:[#allocation3 + $0x2] sm:$0xff]
        %v872 = vld [vmem:[#allocation6 + $0x8] sm:$0xff]
        %v873 = vld [vmem:[#allocation6 + $0x28] sm:$0xff]
        %v874 = vld [vmem:[#allocation6 + $0x48] sm:$0xff]
        %v875 = vld [vmem:[#allocation6 + $0x68] sm:$0xff]
        %v876 = vld [vmem:[#allocation6 + $0x88] sm:$0xff]
        %v877 = vld [vmem:[#allocation6 + $0xa8] sm:$0xff]
        %v878 = vld [vmem:[#allocation6 + $0xc8] sm:$0xff]
        %v879 = vld [vmem:[#allocation6 + $0xe8] sm:$0xff]
        %v880 = vld [vmem:[#allocation6 + $0x108] sm:$0xff]
        %v881 = vld [vmem:[#allocation6 + $0x128] sm:$0xff]
        %v882 = vld [vmem:[#allocation6 + $0x148] sm:$0xff]
        %v883 = vld [vmem:[#allocation6 + $0x168] sm:$0xff]
        %v884 = vld [vmem:[#allocation6 + $0x188] sm:$0xff]
        %v885 = vld [vmem:[#allocation6 + $0x1a8] sm:$0xff]
        %v886 = vld [vmem:[#allocation6 + $0x1c8] sm:$0xff]
        %v887 = vld [vmem:[#allocation6 + $0x1e8] sm:$0xff]
        %v888 = vpack.c.bf16 %v869, %v869
        %v889 = vld [vmem:[%s220 + $0x8] sm:$0xff]
        %v890 = vld [vmem:[%s220 + $0x28] sm:$0xff]
        %v891 = vld [vmem:[%s220 + $0x48] sm:$0xff]
        %v892 = vld [vmem:[%s220 + $0x68] sm:$0xff]
        %v893 = vld [vmem:[%s220 + $0x88] sm:$0xff]
        %v894 = vld [vmem:[%s220 + $0xa8] sm:$0xff]
        %v895 = vld [vmem:[%s220 + $0xc8] sm:$0xff]
        %v896 = vld [vmem:[%s220 + $0xe8] sm:$0xff]
        %v897 = vld [vmem:[%s220 + $0x108] sm:$0xff]
        %v898 = vld [vmem:[%s220 + $0x128] sm:$0xff]
        %v899 = vld [vmem:[%s220 + $0x148] sm:$0xff]
        %v900 = vld [vmem:[%s220 + $0x168] sm:$0xff]
        %v901 = vld [vmem:[%s220 + $0x188] sm:$0xff]
        %v902 = vld [vmem:[%s220 + $0x1a8] sm:$0xff]
        %v903 = vld [vmem:[%s220 + $0x1c8] sm:$0xff]
        %v904 = vld [vmem:[%s220 + $0x1e8] sm:$0xff]
        %v905 = vpack.c.bf16 %v870, %v870
        %v922 = vunpack.c.l.b16 %v889
        %v923 = vunpack.c.h.b16 %v889
        %v924 = vunpack.c.l.b16 %v890
        %v925 = vunpack.c.h.b16 %v890
        %v926 = vunpack.c.l.b16 %v891
        %v927 = vunpack.c.h.b16 %v891
        %v928 = vunpack.c.l.b16 %v892
        %v929 = vunpack.c.h.b16 %v892
        %v930 = vunpack.c.l.b16 %v893
        %v931 = vunpack.c.h.b16 %v893
        %v932 = vunpack.c.l.b16 %v894
        %v933 = vunpack.c.h.b16 %v894
        %v934 = vunpack.c.l.b16 %v895
        %v935 = vunpack.c.h.b16 %v895
        %v936 = vunpack.c.l.b16 %v896
        %v937 = vunpack.c.h.b16 %v896
        %v938 = vunpack.c.l.b16 %v897
        %v939 = vunpack.c.h.b16 %v897
        %v940 = vunpack.c.l.b16 %v898
        %v941 = vunpack.c.h.b16 %v898
        %v942 = vunpack.c.l.b16 %v899
        %v943 = vunpack.c.h.b16 %v899
        %v944 = vunpack.c.l.b16 %v900
        %v945 = vunpack.c.h.b16 %v900
        %v946 = vunpack.c.l.b16 %v901
        %v947 = vunpack.c.h.b16 %v901
        %v948 = vunpack.c.l.b16 %v902
        %v949 = vunpack.c.h.b16 %v902
        %v950 = vunpack.c.l.b16 %v903
        %v951 = vunpack.c.h.b16 %v903
        %v952 = vunpack.c.l.b16 %v904
        %v953 = vunpack.c.h.b16 %v904
        %v954 = vpack.c.b16 %v924, %v922
        %v955 = vpack.c.b16 %v925, %v923
        %v956 = vpack.c.b16 %v928, %v926
        %v957 = vpack.c.b16 %v929, %v927
        %v958 = vpack.c.b16 %v932, %v930
        %v959 = vpack.c.b16 %v933, %v931
        %v960 = vpack.c.b16 %v936, %v934
        %v961 = vpack.c.b16 %v937, %v935
        %v962 = vpack.c.b16 %v940, %v938
        %v963 = vpack.c.b16 %v941, %v939
        %v964 = vpack.c.b16 %v944, %v942
        %v965 = vpack.c.b16 %v945, %v943
        %v966 = vpack.c.b16 %v948, %v946
        %v967 = vpack.c.b16 %v949, %v947
        %v968 = vpack.c.b16 %v952, %v950
        %v969 = vpack.c.b16 %v953, %v951
        %986 = vmatprep.subr.bf16.mxu0 %v955
        %987 = vmatpush1.bf16.msra.mxu0 %v954
        %988 = vmatprep.subr.bf16.mxu0 %v957
        %989 = vmatpush1.bf16.msra.mxu0 %v956
        %990 = vmatprep.subr.bf16.mxu0 %v959
        %991 = vmatpush1.bf16.msra.mxu0 %v958
        %992 = vmatprep.subr.bf16.mxu0 %v961
        %993 = vmatpush1.bf16.msra.mxu0 %v960
        %994 = vmatprep.subr.bf16.mxu0 %v963
        %995 = vmatpush1.bf16.msra.mxu0 %v962
        %996 = vmatprep.subr.bf16.mxu0 %v965
        %997 = vmatpush1.bf16.msra.mxu0 %v964
        %998 = vmatprep.subr.bf16.mxu0 %v967
        %999 = vmatpush1.bf16.msra.mxu0 %v966
        %1000 = vmatprep.subr.bf16.mxu0 %v969
        %1001 = vmatpush1.bf16.msra.mxu0 %v968
        %1002 = vmatprep.subr.bf16.mxu0 0
        %1003 = vmatpush1.bf16.msra.mxu0 0
        %1004 = vmatprep.subr.bf16.mxu0 0
        %1005 = vmatpush1.bf16.msra.mxu0 0
        %1006 = vmatprep.subr.bf16.mxu0 0
        %1007 = vmatpush1.bf16.msra.mxu0 0
        %1008 = vmatprep.subr.bf16.mxu0 0
        %1009 = vmatpush1.bf16.msra.mxu0 0
        %1010 = vmatprep.subr.bf16.mxu0 0
        %1011 = vmatpush1.bf16.msra.mxu0 0
        %1012 = vmatprep.subr.bf16.mxu0 0
        %1013 = vmatpush1.bf16.msra.mxu0 0
        %1014 = vmatprep.subr.bf16.mxu0 0
        %1015 = vmatpush1.bf16.msra.mxu0 0
        %1016 = vmatprep.subr.bf16.mxu0 0
        %1017 = vmatpush1.bf16.msra.mxu0 0
        %1018 = vmatprep.mubr.bf16.mxu0 0
        %1019 = vmatmul.mubr.bf16.gmra.mrb[0].mxu0 %v905
        %v1020 = vpop.f32.mrb[0].mxu0
        %v1021 = vadd.f32 0.0, %v1020
        %v1022 = vpop.f32.mrb[0].mxu0
        %v1023 = vadd.f32 0.0, %v1022
        %v1024 = vpop.f32.mrb[0].mxu0
        %v1025 = vpop.f32.mrb[0].mxu0
        %1026 = vdwg.mxu0
        %v1043 = vunpack.c.l.b16 %v872
        %v1044 = vunpack.c.h.b16 %v872
        %v1045 = vunpack.c.l.b16 %v873
        %v1046 = vunpack.c.h.b16 %v873
        %v1047 = vunpack.c.l.b16 %v874
        %v1048 = vunpack.c.h.b16 %v874
        %v1049 = vunpack.c.l.b16 %v875
        %v1050 = vunpack.c.h.b16 %v875
        %v1051 = vunpack.c.l.b16 %v876
        %v1052 = vunpack.c.h.b16 %v876
        %v1053 = vunpack.c.l.b16 %v877
        %v1054 = vunpack.c.h.b16 %v877
        %v1055 = vunpack.c.l.b16 %v878
        %v1056 = vunpack.c.h.b16 %v878
        %v1057 = vunpack.c.l.b16 %v879
        %v1058 = vunpack.c.h.b16 %v879
        %v1059 = vunpack.c.l.b16 %v880
        %v1060 = vunpack.c.h.b16 %v880
        %v1061 = vunpack.c.l.b16 %v881
        %v1062 = vunpack.c.h.b16 %v881
        %v1063 = vunpack.c.l.b16 %v882
        %v1064 = vunpack.c.h.b16 %v882
        %v1065 = vunpack.c.l.b16 %v883
        %v1066 = vunpack.c.h.b16 %v883
        %v1067 = vunpack.c.l.b16 %v884
        %v1068 = vunpack.c.h.b16 %v884
        %v1069 = vunpack.c.l.b16 %v885
        %v1070 = vunpack.c.h.b16 %v885
        %v1071 = vunpack.c.l.b16 %v886
        %v1072 = vunpack.c.h.b16 %v886
        %v1073 = vunpack.c.l.b16 %v887
        %v1074 = vunpack.c.h.b16 %v887
        %v1075 = vpack.c.b16 %v1045, %v1043
        %v1076 = vpack.c.b16 %v1046, %v1044
        %v1077 = vpack.c.b16 %v1049, %v1047
        %v1078 = vpack.c.b16 %v1050, %v1048
        %v1079 = vpack.c.b16 %v1053, %v1051
        %v1080 = vpack.c.b16 %v1054, %v1052
        %v1081 = vpack.c.b16 %v1057, %v1055
        %v1082 = vpack.c.b16 %v1058, %v1056
        %v1083 = vpack.c.b16 %v1061, %v1059
        %v1084 = vpack.c.b16 %v1062, %v1060
        %v1085 = vpack.c.b16 %v1065, %v1063
        %v1086 = vpack.c.b16 %v1066, %v1064
        %v1087 = vpack.c.b16 %v1069, %v1067
        %v1088 = vpack.c.b16 %v1070, %v1068
        %v1089 = vpack.c.b16 %v1073, %v1071
        %v1090 = vpack.c.b16 %v1074, %v1072
        %1107 = vmatprep.subr.bf16.mxu0 %v1076
        %1108 = vmatpush1.bf16.msra.mxu0 %v1075
        %1109 = vmatprep.subr.bf16.mxu0 %v1078
        %1110 = vmatpush1.bf16.msra.mxu0 %v1077
        %1111 = vmatprep.subr.bf16.mxu0 %v1080
        %1112 = vmatpush1.bf16.msra.mxu0 %v1079
        %1113 = vmatprep.subr.bf16.mxu0 %v1082
        %1114 = vmatpush1.bf16.msra.mxu0 %v1081
        %1115 = vmatprep.subr.bf16.mxu0 %v1084
        %1116 = vmatpush1.bf16.msra.mxu0 %v1083
        %1117 = vmatprep.subr.bf16.mxu0 %v1086
        %1118 = vmatpush1.bf16.msra.mxu0 %v1085
        %1119 = vmatprep.subr.bf16.mxu0 %v1088
        %1120 = vmatpush1.bf16.msra.mxu0 %v1087
        %1121 = vmatprep.subr.bf16.mxu0 %v1090
        %1122 = vmatpush1.bf16.msra.mxu0 %v1089
        %1123 = vmatprep.subr.bf16.mxu0 0
        %1124 = vmatpush1.bf16.msra.mxu0 0
        %1125 = vmatprep.subr.bf16.mxu0 0
        %1126 = vmatpush1.bf16.msra.mxu0 0
        %1127 = vmatprep.subr.bf16.mxu0 0
        %1128 = vmatpush1.bf16.msra.mxu0 0
        %1129 = vmatprep.subr.bf16.mxu0 0
        %1130 = vmatpush1.bf16.msra.mxu0 0
        %1131 = vmatprep.subr.bf16.mxu0 0
        %1132 = vmatpush1.bf16.msra.mxu0 0
        %1133 = vmatprep.subr.bf16.mxu0 0
        %1134 = vmatpush1.bf16.msra.mxu0 0
        %1135 = vmatprep.subr.bf16.mxu0 0
        %1136 = vmatpush1.bf16.msra.mxu0 0
        %1137 = vmatprep.subr.bf16.mxu0 0
        %1138 = vmatpush1.bf16.msra.mxu0 0
        %1139 = vmatprep.mubr.bf16.mxu0 0
        %1140 = vmatmul.mubr.bf16.gmra.mrb[0].mxu0 %v888
        %v1141 = vpop.f32.mrb[0].mxu0
        %v1142 = vadd.f32 %v1021, %v1141
        %v1143 = vpop.f32.mrb[0].mxu0
        %v1144 = vadd.f32 %v1023, %v1143
        %v1145 = vpop.f32.mrb[0].mxu0
        %v1146 = vpop.f32.mrb[0].mxu0
        %1147 = vdwg.mxu0
        %v1148 = vld [vmem:[%s416 + $0x8] sm:$0xff]
        %v1149 = vld [vmem:[%s416 + $0x28] sm:$0xff]
        %v1150 = vld [vmem:[%s416 + $0x48] sm:$0xff]
        %v1151 = vld [vmem:[%s416 + $0x68] sm:$0xff]
        %v1152 = vld [vmem:[%s416 + $0x88] sm:$0xff]
        %v1153 = vld [vmem:[%s416 + $0xa8] sm:$0xff]
        %v1154 = vld [vmem:[%s416 + $0xc8] sm:$0xff]
        %v1155 = vld [vmem:[%s416 + $0xe8] sm:$0xff]
        %v1156 = vld [vmem:[%s416 + $0x108] sm:$0xff]
        %v1157 = vld [vmem:[%s416 + $0x128] sm:$0xff]
        %v1158 = vld [vmem:[%s416 + $0x148] sm:$0xff]
        %v1159 = vld [vmem:[%s416 + $0x168] sm:$0xff]
        %v1160 = vld [vmem:[%s416 + $0x188] sm:$0xff]
        %v1161 = vld [vmem:[%s416 + $0x1a8] sm:$0xff]
        %v1162 = vld [vmem:[%s416 + $0x1c8] sm:$0xff]
        %v1163 = vld [vmem:[%s416 + $0x1e8] sm:$0xff]
        %v1164 = vpack.c.bf16 %v871, %v871
        %v1181 = vunpack.c.l.b16 %v1148
        %v1182 = vunpack.c.h.b16 %v1148
        %v1183 = vunpack.c.l.b16 %v1149
        %v1184 = vunpack.c.h.b16 %v1149
        %v1185 = vunpack.c.l.b16 %v1150
        %v1186 = vunpack.c.h.b16 %v1150
        %v1187 = vunpack.c.l.b16 %v1151
        %v1188 = vunpack.c.h.b16 %v1151
        %v1189 = vunpack.c.l.b16 %v1152
        %v1190 = vunpack.c.h.b16 %v1152
        %v1191 = vunpack.c.l.b16 %v1153
        %v1192 = vunpack.c.h.b16 %v1153
        %v1193 = vunpack.c.l.b16 %v1154
        %v1194 = vunpack.c.h.b16 %v1154
        %v1195 = vunpack.c.l.b16 %v1155
        %v1196 = vunpack.c.h.b16 %v1155
        %v1197 = vunpack.c.l.b16 %v1156
        %v1198 = vunpack.c.h.b16 %v1156
        %v1199 = vunpack.c.l.b16 %v1157
        %v1200 = vunpack.c.h.b16 %v1157
        %v1201 = vunpack.c.l.b16 %v1158
        %v1202 = vunpack.c.h.b16 %v1158
        %v1203 = vunpack.c.l.b16 %v1159
        %v1204 = vunpack.c.h.b16 %v1159
        %v1205 = vunpack.c.l.b16 %v1160
        %v1206 = vunpack.c.h.b16 %v1160
        %v1207 = vunpack.c.l.b16 %v1161
        %v1208 = vunpack.c.h.b16 %v1161
        %v1209 = vunpack.c.l.b16 %v1162
        %v1210 = vunpack.c.h.b16 %v1162
        %v1211 = vunpack.c.l.b16 %v1163
        %v1212 = vunpack.c.h.b16 %v1163
        %v1213 = vpack.c.b16 %v1183, %v1181
        %v1214 = vpack.c.b16 %v1184, %v1182
        %v1215 = vpack.c.b16 %v1187, %v1185
        %v1216 = vpack.c.b16 %v1188, %v1186
        %v1217 = vpack.c.b16 %v1191, %v1189
        %v1218 = vpack.c.b16 %v1192, %v1190
        %v1219 = vpack.c.b16 %v1195, %v1193
        %v1220 = vpack.c.b16 %v1196, %v1194
        %v1221 = vpack.c.b16 %v1199, %v1197
        %v1222 = vpack.c.b16 %v1200, %v1198
        %v1223 = vpack.c.b16 %v1203, %v1201
        %v1224 = vpack.c.b16 %v1204, %v1202
        %v1225 = vpack.c.b16 %v1207, %v1205
        %v1226 = vpack.c.b16 %v1208, %v1206
        %v1227 = vpack.c.b16 %v1211, %v1209
        %v1228 = vpack.c.b16 %v1212, %v1210
        %1245 = vmatprep.subr.bf16.mxu0 %v1214
        %1246 = vmatpush1.bf16.msra.mxu0 %v1213
        %1247 = vmatprep.subr.bf16.mxu0 %v1216
        %1248 = vmatpush1.bf16.msra.mxu0 %v1215
        %1249 = vmatprep.subr.bf16.mxu0 %v1218
        %1250 = vmatpush1.bf16.msra.mxu0 %v1217
        %1251 = vmatprep.subr.bf16.mxu0 %v1220
        %1252 = vmatpush1.bf16.msra.mxu0 %v1219
        %1253 = vmatprep.subr.bf16.mxu0 %v1222
        %1254 = vmatpush1.bf16.msra.mxu0 %v1221
        %1255 = vmatprep.subr.bf16.mxu0 %v1224
        %1256 = vmatpush1.bf16.msra.mxu0 %v1223
        %1257 = vmatprep.subr.bf16.mxu0 %v1226
        %1258 = vmatpush1.bf16.msra.mxu0 %v1225
        %1259 = vmatprep.subr.bf16.mxu0 %v1228
        %1260 = vmatpush1.bf16.msra.mxu0 %v1227
        %1261 = vmatprep.subr.bf16.mxu0 0
        %1262 = vmatpush1.bf16.msra.mxu0 0
        %1263 = vmatprep.subr.bf16.mxu0 0
        %1264 = vmatpush1.bf16.msra.mxu0 0
        %1265 = vmatprep.subr.bf16.mxu0 0
        %1266 = vmatpush1.bf16.msra.mxu0 0
        %1267 = vmatprep.subr.bf16.mxu0 0
        %1268 = vmatpush1.bf16.msra.mxu0 0
        %1269 = vmatprep.subr.bf16.mxu0 0
        %1270 = vmatpush1.bf16.msra.mxu0 0
        %1271 = vmatprep.subr.bf16.mxu0 0
        %1272 = vmatpush1.bf16.msra.mxu0 0
        %1273 = vmatprep.subr.bf16.mxu0 0
        %1274 = vmatpush1.bf16.msra.mxu0 0
        %1275 = vmatprep.subr.bf16.mxu0 0
        %1276 = vmatpush1.bf16.msra.mxu0 0
        %1277 = vmatprep.mubr.bf16.mxu0 0
        %1278 = vmatmul.mubr.bf16.gmra.mrb[0].mxu0 %v1164
        %v1279 = vpop.f32.mrb[0].mxu0
        %v1280 = vadd.f32 0.0, %v1279
        %v1281 = vpop.f32.mrb[0].mxu0
        %v1282 = vadd.f32 0.0, %v1281
        %v1283 = vpop.f32.mrb[0].mxu0
        %v1284 = vpop.f32.mrb[0].mxu0
        %1285 = vdwg.mxu0
        %v1286 = vadd.f32 %v1142, %v1280
        %v1287 = vadd.f32 %v1144, %v1282
        %v1288 = vld [vmem:[%s2 + $0x2] sm:$0x3]
        %v1290 = vlaneseq
        %v1291 = vshrl.u32 %v1290, 7
        %v1292 = vsub.s32 0, %v1291
        %v1293 = vrot.slane %v1288, %v1292
        %v1294 = vlaneseq
        %v1295 = vshrl.u32 %v1294, 7
        %v1296 = vsub.s32 1, %v1295
        %v1297 = vrot.slane %v1288, %v1296
        %v1300 = vadd.f32 %v1286, %v1293
        %v1301 = vadd.f32 %v1287, %v1297
        %1302 = vst [vmem:[%s185] sm:$0xff] %v1300
        %1303 = vst [vmem:[%s185 + $0x8] sm:$0xff] %v1301
        %v1304 = vld [vmem:[#allocation3] ss:$2 sm:$0xf]
        %s1305 = scalar_lea.vmem [#allocation3], 1
        %v1306 = vld [vmem:[%s1305] ss:$2 sm:$0xf]
        %s1307 = scalar_lea.vmem [#allocation3], 2
        %v1308 = vld [vmem:[%s1307] ss:$2 sm:$0xf]
        %v1309 = vld [vmem:[#allocation6 + $0x10] sm:$0xf]
        %v1310 = vld [vmem:[#allocation6 + $0x30] sm:$0xf]
        %v1311 = vld [vmem:[#allocation6 + $0x50] sm:$0xf]
        %v1312 = vld [vmem:[#allocation6 + $0x70] sm:$0xf]
        %v1313 = vld [vmem:[#allocation6 + $0x90] sm:$0xf]
        %v1314 = vld [vmem:[#allocation6 + $0xb0] sm:$0xf]
        %v1315 = vld [vmem:[#allocation6 + $0xd0] sm:$0xf]
        %v1316 = vld [vmem:[#allocation6 + $0xf0] sm:$0xf]
        %v1317 = vld [vmem:[#allocation6 + $0x110] sm:$0xf]
        %v1318 = vld [vmem:[#allocation6 + $0x130] sm:$0xf]
        %v1319 = vld [vmem:[#allocation6 + $0x150] sm:$0xf]
        %v1320 = vld [vmem:[#allocation6 + $0x170] sm:$0xf]
        %v1321 = vld [vmem:[#allocation6 + $0x190] sm:$0xf]
        %v1322 = vld [vmem:[#allocation6 + $0x1b0] sm:$0xf]
        %v1323 = vld [vmem:[#allocation6 + $0x1d0] sm:$0xf]
        %v1324 = vld [vmem:[#allocation6 + $0x1f0] sm:$0xf]
        %v1325 = vpack.c.bf16 %v1304, %v1304
        %v1326 = vld [vmem:[%s220 + $0x10] sm:$0xf]
        %v1327 = vld [vmem:[%s220 + $0x30] sm:$0xf]
        %v1328 = vld [vmem:[%s220 + $0x50] sm:$0xf]
        %v1329 = vld [vmem:[%s220 + $0x70] sm:$0xf]
        %v1330 = vld [vmem:[%s220 + $0x90] sm:$0xf]
        %v1331 = vld [vmem:[%s220 + $0xb0] sm:$0xf]
        %v1332 = vld [vmem:[%s220 + $0xd0] sm:$0xf]
        %v1333 = vld [vmem:[%s220 + $0xf0] sm:$0xf]
        %v1334 = vld [vmem:[%s220 + $0x110] sm:$0xf]
        %v1335 = vld [vmem:[%s220 + $0x130] sm:$0xf]
        %v1336 = vld [vmem:[%s220 + $0x150] sm:$0xf]
        %v1337 = vld [vmem:[%s220 + $0x170] sm:$0xf]
        %v1338 = vld [vmem:[%s220 + $0x190] sm:$0xf]
        %v1339 = vld [vmem:[%s220 + $0x1b0] sm:$0xf]
        %v1340 = vld [vmem:[%s220 + $0x1d0] sm:$0xf]
        %v1341 = vld [vmem:[%s220 + $0x1f0] sm:$0xf]
        %v1342 = vpack.c.bf16 %v1306, %v1306
        %v1359 = vunpack.c.l.b16 %v1326
        %v1360 = vunpack.c.l.b16 %v1327
        %v1361 = vunpack.c.l.b16 %v1328
        %v1362 = vunpack.c.l.b16 %v1329
        %v1363 = vunpack.c.l.b16 %v1330
        %v1364 = vunpack.c.l.b16 %v1331
        %v1365 = vunpack.c.l.b16 %v1332
        %v1366 = vunpack.c.l.b16 %v1333
        %v1367 = vunpack.c.l.b16 %v1334
        %v1368 = vunpack.c.l.b16 %v1335
        %v1369 = vunpack.c.l.b16 %v1336
        %v1370 = vunpack.c.l.b16 %v1337
        %v1371 = vunpack.c.l.b16 %v1338
        %v1372 = vunpack.c.l.b16 %v1339
        %v1373 = vunpack.c.l.b16 %v1340
        %v1374 = vunpack.c.l.b16 %v1341
        %v1375 = vpack.c.b16 %v1360, %v1359
        %v1376 = vpack.c.b16 %v1362, %v1361
        %v1377 = vpack.c.b16 %v1364, %v1363
        %v1378 = vpack.c.b16 %v1366, %v1365
        %v1379 = vpack.c.b16 %v1368, %v1367
        %v1380 = vpack.c.b16 %v1370, %v1369
        %v1381 = vpack.c.b16 %v1372, %v1371
        %v1382 = vpack.c.b16 %v1374, %v1373
        %1391 = vmatprep.subr.bf16.mxu0 0
        %1392 = vmatpush1.bf16.msra.mxu0 %v1375
        %1393 = vmatprep.subr.bf16.mxu0 0
        %1394 = vmatpush1.bf16.msra.mxu0 %v1376
        %1395 = vmatprep.subr.bf16.mxu0 0
        %1396 = vmatpush1.bf16.msra.mxu0 %v1377
        %1397 = vmatprep.subr.bf16.mxu0 0
        %1398 = vmatpush1.bf16.msra.mxu0 %v1378
        %1399 = vmatprep.subr.bf16.mxu0 0
        %1400 = vmatpush1.bf16.msra.mxu0 %v1379
        %1401 = vmatprep.subr.bf16.mxu0 0
        %1402 = vmatpush1.bf16.msra.mxu0 %v1380
        %1403 = vmatprep.subr.bf16.mxu0 0
        %1404 = vmatpush1.bf16.msra.mxu0 %v1381
        %1405 = vmatprep.subr.bf16.mxu0 0
        %1406 = vmatpush1.bf16.msra.mxu0 %v1382
        %1407 = vmatprep.subr.bf16.mxu0 0
        %1408 = vmatpush1.bf16.msra.mxu0 0
        %1409 = vmatprep.subr.bf16.mxu0 0
        %1410 = vmatpush1.bf16.msra.mxu0 0
        %1411 = vmatprep.subr.bf16.mxu0 0
        %1412 = vmatpush1.bf16.msra.mxu0 0
        %1413 = vmatprep.subr.bf16.mxu0 0
        %1414 = vmatpush1.bf16.msra.mxu0 0
        %1415 = vmatprep.subr.bf16.mxu0 0
        %1416 = vmatpush1.bf16.msra.mxu0 0
        %1417 = vmatprep.subr.bf16.mxu0 0
        %1418 = vmatpush1.bf16.msra.mxu0 0
        %1419 = vmatprep.subr.bf16.mxu0 0
        %1420 = vmatpush1.bf16.msra.mxu0 0
        %1421 = vmatprep.subr.bf16.mxu0 0
        %1422 = vmatpush1.bf16.msra.mxu0 0
        %1423 = vmatprep.mubr.bf16.mxu0 0
        %1424 = vmatmul.mubr.bf16.gmra.mrb[0].mxu0 %v1342
        %v1425 = vpop.f32.mrb[0].mxu0
        %v1426 = vadd.f32 0.0, %v1425
        %v1427 = vpop.f32.mrb[0].mxu0
        %v1428 = vpop.f32.mrb[0].mxu0
        %v1429 = vpop.f32.mrb[0].mxu0
        %1430 = vdwg.mxu0
        %v1447 = vunpack.c.l.b16 %v1309
        %v1448 = vunpack.c.l.b16 %v1310
        %v1449 = vunpack.c.l.b16 %v1311
        %v1450 = vunpack.c.l.b16 %v1312
        %v1451 = vunpack.c.l.b16 %v1313
        %v1452 = vunpack.c.l.b16 %v1314
        %v1453 = vunpack.c.l.b16 %v1315
        %v1454 = vunpack.c.l.b16 %v1316
        %v1455 = vunpack.c.l.b16 %v1317
        %v1456 = vunpack.c.l.b16 %v1318
        %v1457 = vunpack.c.l.b16 %v1319
        %v1458 = vunpack.c.l.b16 %v1320
        %v1459 = vunpack.c.l.b16 %v1321
        %v1460 = vunpack.c.l.b16 %v1322
        %v1461 = vunpack.c.l.b16 %v1323
        %v1462 = vunpack.c.l.b16 %v1324
        %v1463 = vpack.c.b16 %v1448, %v1447
        %v1464 = vpack.c.b16 %v1450, %v1449
        %v1465 = vpack.c.b16 %v1452, %v1451
        %v1466 = vpack.c.b16 %v1454, %v1453
        %v1467 = vpack.c.b16 %v1456, %v1455
        %v1468 = vpack.c.b16 %v1458, %v1457
        %v1469 = vpack.c.b16 %v1460, %v1459
        %v1470 = vpack.c.b16 %v1462, %v1461
        %1479 = vmatprep.subr.bf16.mxu0 0
        %1480 = vmatpush1.bf16.msra.mxu0 %v1463
        %1481 = vmatprep.subr.bf16.mxu0 0
        %1482 = vmatpush1.bf16.msra.mxu0 %v1464
        %1483 = vmatprep.subr.bf16.mxu0 0
        %1484 = vmatpush1.bf16.msra.mxu0 %v1465
        %1485 = vmatprep.subr.bf16.mxu0 0
        %1486 = vmatpush1.bf16.msra.mxu0 %v1466
        %1487 = vmatprep.subr.bf16.mxu0 0
        %1488 = vmatpush1.bf16.msra.mxu0 %v1467
        %1489 = vmatprep.subr.bf16.mxu0 0
        %1490 = vmatpush1.bf16.msra.mxu0 %v1468
        %1491 = vmatprep.subr.bf16.mxu0 0
        %1492 = vmatpush1.bf16.msra.mxu0 %v1469
        %1493 = vmatprep.subr.bf16.mxu0 0
        %1494 = vmatpush1.bf16.msra.mxu0 %v1470
        %1495 = vmatprep.subr.bf16.mxu0 0
        %1496 = vmatpush1.bf16.msra.mxu0 0
        %1497 = vmatprep.subr.bf16.mxu0 0
        %1498 = vmatpush1.bf16.msra.mxu0 0
        %1499 = vmatprep.subr.bf16.mxu0 0
        %1500 = vmatpush1.bf16.msra.mxu0 0
        %1501 = vmatprep.subr.bf16.mxu0 0
        %1502 = vmatpush1.bf16.msra.mxu0 0
        %1503 = vmatprep.subr.bf16.mxu0 0
        %1504 = vmatpush1.bf16.msra.mxu0 0
        %1505 = vmatprep.subr.bf16.mxu0 0
        %1506 = vmatpush1.bf16.msra.mxu0 0
        %1507 = vmatprep.subr.bf16.mxu0 0
        %1508 = vmatpush1.bf16.msra.mxu0 0
        %1509 = vmatprep.subr.bf16.mxu0 0
        %1510 = vmatpush1.bf16.msra.mxu0 0
        %1511 = vmatprep.mubr.bf16.mxu0 0
        %1512 = vmatmul.mubr.bf16.gmra.mrb[0].mxu0 %v1325
        %v1513 = vpop.f32.mrb[0].mxu0
        %v1514 = vadd.f32 %v1426, %v1513
        %v1515 = vpop.f32.mrb[0].mxu0
        %v1516 = vpop.f32.mrb[0].mxu0
        %v1517 = vpop.f32.mrb[0].mxu0
        %1518 = vdwg.mxu0
        %v1519 = vld [vmem:[%s416 + $0x10] sm:$0xf]
        %v1520 = vld [vmem:[%s416 + $0x30] sm:$0xf]
        %v1521 = vld [vmem:[%s416 + $0x50] sm:$0xf]
        %v1522 = vld [vmem:[%s416 + $0x70] sm:$0xf]
        %v1523 = vld [vmem:[%s416 + $0x90] sm:$0xf]
        %v1524 = vld [vmem:[%s416 + $0xb0] sm:$0xf]
        %v1525 = vld [vmem:[%s416 + $0xd0] sm:$0xf]
        %v1526 = vld [vmem:[%s416 + $0xf0] sm:$0xf]
        %v1527 = vld [vmem:[%s416 + $0x110] sm:$0xf]
        %v1528 = vld [vmem:[%s416 + $0x130] sm:$0xf]
        %v1529 = vld [vmem:[%s416 + $0x150] sm:$0xf]
        %v1530 = vld [vmem:[%s416 + $0x170] sm:$0xf]
        %v1531 = vld [vmem:[%s416 + $0x190] sm:$0xf]
        %v1532 = vld [vmem:[%s416 + $0x1b0] sm:$0xf]
        %v1533 = vld [vmem:[%s416 + $0x1d0] sm:$0xf]
        %v1534 = vld [vmem:[%s416 + $0x1f0] sm:$0xf]
        %v1535 = vpack.c.bf16 %v1308, %v1308
        %v1552 = vunpack.c.l.b16 %v1519
        %v1553 = vunpack.c.l.b16 %v1520
        %v1554 = vunpack.c.l.b16 %v1521
        %v1555 = vunpack.c.l.b16 %v1522
        %v1556 = vunpack.c.l.b16 %v1523
        %v1557 = vunpack.c.l.b16 %v1524
        %v1558 = vunpack.c.l.b16 %v1525
        %v1559 = vunpack.c.l.b16 %v1526
        %v1560 = vunpack.c.l.b16 %v1527
        %v1561 = vunpack.c.l.b16 %v1528
        %v1562 = vunpack.c.l.b16 %v1529
        %v1563 = vunpack.c.l.b16 %v1530
        %v1564 = vunpack.c.l.b16 %v1531
        %v1565 = vunpack.c.l.b16 %v1532
        %v1566 = vunpack.c.l.b16 %v1533
        %v1567 = vunpack.c.l.b16 %v1534
        %v1568 = vpack.c.b16 %v1553, %v1552
        %v1569 = vpack.c.b16 %v1555, %v1554
        %v1570 = vpack.c.b16 %v1557, %v1556
        %v1571 = vpack.c.b16 %v1559, %v1558
        %v1572 = vpack.c.b16 %v1561, %v1560
        %v1573 = vpack.c.b16 %v1563, %v1562
        %v1574 = vpack.c.b16 %v1565, %v1564
        %v1575 = vpack.c.b16 %v1567, %v1566
        %1584 = vmatprep.subr.bf16.mxu0 0
        %1585 = vmatpush1.bf16.msra.mxu0 %v1568
        %1586 = vmatprep.subr.bf16.mxu0 0
        %1587 = vmatpush1.bf16.msra.mxu0 %v1569
        %1588 = vmatprep.subr.bf16.mxu0 0
        %1589 = vmatpush1.bf16.msra.mxu0 %v1570
        %1590 = vmatprep.subr.bf16.mxu0 0
        %1591 = vmatpush1.bf16.msra.mxu0 %v1571
        %1592 = vmatprep.subr.bf16.mxu0 0
        %1593 = vmatpush1.bf16.msra.mxu0 %v1572
        %1594 = vmatprep.subr.bf16.mxu0 0
        %1595 = vmatpush1.bf16.msra.mxu0 %v1573
        %1596 = vmatprep.subr.bf16.mxu0 0
        %1597 = vmatpush1.bf16.msra.mxu0 %v1574
        %1598 = vmatprep.subr.bf16.mxu0 0
        %1599 = vmatpush1.bf16.msra.mxu0 %v1575
        %1600 = vmatprep.subr.bf16.mxu0 0
        %1601 = vmatpush1.bf16.msra.mxu0 0
        %1602 = vmatprep.subr.bf16.mxu0 0
        %1603 = vmatpush1.bf16.msra.mxu0 0
        %1604 = vmatprep.subr.bf16.mxu0 0
        %1605 = vmatpush1.bf16.msra.mxu0 0
        %1606 = vmatprep.subr.bf16.mxu0 0
        %1607 = vmatpush1.bf16.msra.mxu0 0
        %1608 = vmatprep.subr.bf16.mxu0 0
        %1609 = vmatpush1.bf16.msra.mxu0 0
        %1610 = vmatprep.subr.bf16.mxu0 0
        %1611 = vmatpush1.bf16.msra.mxu0 0
        %1612 = vmatprep.subr.bf16.mxu0 0
        %1613 = vmatpush1.bf16.msra.mxu0 0
        %1614 = vmatprep.subr.bf16.mxu0 0
        %1615 = vmatpush1.bf16.msra.mxu0 0
        %1616 = vmatprep.mubr.bf16.mxu0 0
        %1617 = vmatmul.mubr.bf16.gmra.mrb[0].mxu0 %v1535
        %v1618 = vpop.f32.mrb[0].mxu0
        %v1619 = vadd.f32 0.0, %v1618
        %v1620 = vpop.f32.mrb[0].mxu0
        %v1621 = vpop.f32.mrb[0].mxu0
        %v1622 = vpop.f32.mrb[0].mxu0
        %1623 = vdwg.mxu0
        %v1624 = vadd.f32 %v1514, %v1619
        %v1625 = vld [vmem:[%s2 + $0x4] sm:$0x1]
        %v1627 = vlaneseq
        %v1628 = vshrl.u32 %v1627, 7
        %v1629 = vsub.s32 0, %v1628
        %v1630 = vrot.slane %v1625, %v1629
        %v1632 = vadd.f32 %v1624, %v1630
        %v1633 = vmax.f32 %v1632, 0.0
        %1634 = vst [vmem:[#allocation4 + $0x1] sm:$0xf] %v1633
        %v1635 = vld [vmem:[#allocation4] sm:$0xf]
        %v1636 = vld [vmem:[#allocation4 + $0x1] sm:$0xf]
        %v1637 = vld [vmem:[#allocation4 + $0x2] sm:$0xf]
        %v1638 = vld [vmem:[#allocation6 + $0x14] sm:$0xf]
        %v1639 = vld [vmem:[#allocation6 + $0x34] sm:$0xf]
        %v1640 = vld [vmem:[#allocation6 + $0x54] sm:$0xf]
        %v1641 = vld [vmem:[#allocation6 + $0x74] sm:$0xf]
        %v1642 = vld [vmem:[#allocation6 + $0x94] sm:$0xf]
        %v1643 = vld [vmem:[#allocation6 + $0xb4] sm:$0xf]
        %v1644 = vld [vmem:[#allocation6 + $0xd4] sm:$0xf]
        %v1645 = vld [vmem:[#allocation6 + $0xf4] sm:$0xf]
        %v1646 = vld [vmem:[#allocation6 + $0x114] sm:$0xf]
        %v1647 = vld [vmem:[#allocation6 + $0x134] sm:$0xf]
        %v1648 = vld [vmem:[#allocation6 + $0x154] sm:$0xf]
        %v1649 = vld [vmem:[#allocation6 + $0x174] sm:$0xf]
        %v1650 = vld [vmem:[#allocation6 + $0x194] sm:$0xf]
        %v1651 = vld [vmem:[#allocation6 + $0x1b4] sm:$0xf]
        %v1652 = vld [vmem:[#allocation6 + $0x1d4] sm:$0xf]
        %v1653 = vld [vmem:[#allocation6 + $0x1f4] sm:$0xf]
        %v1654 = vpack.c.bf16 %v1635, %v1635
        %v1655 = vld [vmem:[%s220 + $0x14] sm:$0xf]
        %v1656 = vld [vmem:[%s220 + $0x34] sm:$0xf]
        %v1657 = vld [vmem:[%s220 + $0x54] sm:$0xf]
        %v1658 = vld [vmem:[%s220 + $0x74] sm:$0xf]
        %v1659 = vld [vmem:[%s220 + $0x94] sm:$0xf]
        %v1660 = vld [vmem:[%s220 + $0xb4] sm:$0xf]
        %v1661 = vld [vmem:[%s220 + $0xd4] sm:$0xf]
        %v1662 = vld [vmem:[%s220 + $0xf4] sm:$0xf]
        %v1663 = vld [vmem:[%s220 + $0x114] sm:$0xf]
        %v1664 = vld [vmem:[%s220 + $0x134] sm:$0xf]
        %v1665 = vld [vmem:[%s220 + $0x154] sm:$0xf]
        %v1666 = vld [vmem:[%s220 + $0x174] sm:$0xf]
        %v1667 = vld [vmem:[%s220 + $0x194] sm:$0xf]
        %v1668 = vld [vmem:[%s220 + $0x1b4] sm:$0xf]
        %v1669 = vld [vmem:[%s220 + $0x1d4] sm:$0xf]
        %v1670 = vld [vmem:[%s220 + $0x1f4] sm:$0xf]
        %v1671 = vpack.c.bf16 %v1636, %v1636
        %v1688 = vunpack.c.l.b16 %v1655
        %v1689 = vunpack.c.l.b16 %v1656
        %v1690 = vunpack.c.l.b16 %v1657
        %v1691 = vunpack.c.l.b16 %v1658
        %v1692 = vunpack.c.l.b16 %v1659
        %v1693 = vunpack.c.l.b16 %v1660
        %v1694 = vunpack.c.l.b16 %v1661
        %v1695 = vunpack.c.l.b16 %v1662
        %v1696 = vunpack.c.l.b16 %v1663
        %v1697 = vunpack.c.l.b16 %v1664
        %v1698 = vunpack.c.l.b16 %v1665
        %v1699 = vunpack.c.l.b16 %v1666
        %v1700 = vunpack.c.l.b16 %v1667
        %v1701 = vunpack.c.l.b16 %v1668
        %v1702 = vunpack.c.l.b16 %v1669
        %v1703 = vunpack.c.l.b16 %v1670
        %v1704 = vpack.c.b16 %v1689, %v1688
        %v1705 = vpack.c.b16 %v1691, %v1690
        %v1706 = vpack.c.b16 %v1693, %v1692
        %v1707 = vpack.c.b16 %v1695, %v1694
        %v1708 = vpack.c.b16 %v1697, %v1696
        %v1709 = vpack.c.b16 %v1699, %v1698
        %v1710 = vpack.c.b16 %v1701, %v1700
        %v1711 = vpack.c.b16 %v1703, %v1702
        %1720 = vmatprep.subr.bf16.mxu0 0
        %1721 = vmatpush1.bf16.msra.mxu0 %v1704
        %1722 = vmatprep.subr.bf16.mxu0 0
        %1723 = vmatpush1.bf16.msra.mxu0 %v1705
        %1724 = vmatprep.subr.bf16.mxu0 0
        %1725 = vmatpush1.bf16.msra.mxu0 %v1706
        %1726 = vmatprep.subr.bf16.mxu0 0
        %1727 = vmatpush1.bf16.msra.mxu0 %v1707
        %1728 = vmatprep.subr.bf16.mxu0 0
        %1729 = vmatpush1.bf16.msra.mxu0 %v1708
        %1730 = vmatprep.subr.bf16.mxu0 0
        %1731 = vmatpush1.bf16.msra.mxu0 %v1709
        %1732 = vmatprep.subr.bf16.mxu0 0
        %1733 = vmatpush1.bf16.msra.mxu0 %v1710
        %1734 = vmatprep.subr.bf16.mxu0 0
        %1735 = vmatpush1.bf16.msra.mxu0 %v1711
        %1736 = vmatprep.subr.bf16.mxu0 0
        %1737 = vmatpush1.bf16.msra.mxu0 0
        %1738 = vmatprep.subr.bf16.mxu0 0
        %1739 = vmatpush1.bf16.msra.mxu0 0
        %1740 = vmatprep.subr.bf16.mxu0 0
        %1741 = vmatpush1.bf16.msra.mxu0 0
        %1742 = vmatprep.subr.bf16.mxu0 0
        %1743 = vmatpush1.bf16.msra.mxu0 0
        %1744 = vmatprep.subr.bf16.mxu0 0
        %1745 = vmatpush1.bf16.msra.mxu0 0
        %1746 = vmatprep.subr.bf16.mxu0 0
        %1747 = vmatpush1.bf16.msra.mxu0 0
        %1748 = vmatprep.subr.bf16.mxu0 0
        %1749 = vmatpush1.bf16.msra.mxu0 0
        %1750 = vmatprep.subr.bf16.mxu0 0
        %1751 = vmatpush1.bf16.msra.mxu0 0
        %1752 = vmatprep.mubr.bf16.mxu0 0
        %1753 = vmatmul.mubr.bf16.gmra.mrb[0].mxu0 %v1671
        %v1754 = vpop.f32.mrb[0].mxu0
        %v1755 = vadd.f32 0.0, %v1754
        %v1756 = vpop.f32.mrb[0].mxu0
        %v1757 = vpop.f32.mrb[0].mxu0
        %v1758 = vpop.f32.mrb[0].mxu0
        %1759 = vdwg.mxu0
        %v1776 = vunpack.c.l.b16 %v1638
        %v1777 = vunpack.c.l.b16 %v1639
        %v1778 = vunpack.c.l.b16 %v1640
        %v1779 = vunpack.c.l.b16 %v1641
        %v1780 = vunpack.c.l.b16 %v1642
        %v1781 = vunpack.c.l.b16 %v1643
        %v1782 = vunpack.c.l.b16 %v1644
        %v1783 = vunpack.c.l.b16 %v1645
        %v1784 = vunpack.c.l.b16 %v1646
        %v1785 = vunpack.c.l.b16 %v1647
        %v1786 = vunpack.c.l.b16 %v1648
        %v1787 = vunpack.c.l.b16 %v1649
        %v1788 = vunpack.c.l.b16 %v1650
        %v1789 = vunpack.c.l.b16 %v1651
        %v1790 = vunpack.c.l.b16 %v1652
        %v1791 = vunpack.c.l.b16 %v1653
        %v1792 = vpack.c.b16 %v1777, %v1776
        %v1793 = vpack.c.b16 %v1779, %v1778
        %v1794 = vpack.c.b16 %v1781, %v1780
        %v1795 = vpack.c.b16 %v1783, %v1782
        %v1796 = vpack.c.b16 %v1785, %v1784
        %v1797 = vpack.c.b16 %v1787, %v1786
        %v1798 = vpack.c.b16 %v1789, %v1788
        %v1799 = vpack.c.b16 %v1791, %v1790
        %1808 = vmatprep.subr.bf16.mxu0 0
        %1809 = vmatpush1.bf16.msra.mxu0 %v1792
        %1810 = vmatprep.subr.bf16.mxu0 0
        %1811 = vmatpush1.bf16.msra.mxu0 %v1793
        %1812 = vmatprep.subr.bf16.mxu0 0
        %1813 = vmatpush1.bf16.msra.mxu0 %v1794
        %1814 = vmatprep.subr.bf16.mxu0 0
        %1815 = vmatpush1.bf16.msra.mxu0 %v1795
        %1816 = vmatprep.subr.bf16.mxu0 0
        %1817 = vmatpush1.bf16.msra.mxu0 %v1796
        %1818 = vmatprep.subr.bf16.mxu0 0
        %1819 = vmatpush1.bf16.msra.mxu0 %v1797
        %1820 = vmatprep.subr.bf16.mxu0 0
        %1821 = vmatpush1.bf16.msra.mxu0 %v1798
        %1822 = vmatprep.subr.bf16.mxu0 0
        %1823 = vmatpush1.bf16.msra.mxu0 %v1799
        %1824 = vmatprep.subr.bf16.mxu0 0
        %1825 = vmatpush1.bf16.msra.mxu0 0
        %1826 = vmatprep.subr.bf16.mxu0 0
        %1827 = vmatpush1.bf16.msra.mxu0 0
        %1828 = vmatprep.subr.bf16.mxu0 0
        %1829 = vmatpush1.bf16.msra.mxu0 0
        %1830 = vmatprep.subr.bf16.mxu0 0
        %1831 = vmatpush1.bf16.msra.mxu0 0
        %1832 = vmatprep.subr.bf16.mxu0 0
        %1833 = vmatpush1.bf16.msra.mxu0 0
        %1834 = vmatprep.subr.bf16.mxu0 0
        %1835 = vmatpush1.bf16.msra.mxu0 0
        %1836 = vmatprep.subr.bf16.mxu0 0
        %1837 = vmatpush1.bf16.msra.mxu0 0
        %1838 = vmatprep.subr.bf16.mxu0 0
        %1839 = vmatpush1.bf16.msra.mxu0 0
        %1840 = vmatprep.mubr.bf16.mxu0 0
        %1841 = vmatmul.mubr.bf16.gmra.mrb[0].mxu0 %v1654
        %v1842 = vpop.f32.mrb[0].mxu0
        %v1843 = vadd.f32 %v1755, %v1842
        %v1844 = vpop.f32.mrb[0].mxu0
        %v1845 = vpop.f32.mrb[0].mxu0
        %v1846 = vpop.f32.mrb[0].mxu0
        %1847 = vdwg.mxu0
        %v1848 = vld [vmem:[%s416 + $0x14] sm:$0xf]
        %v1849 = vld [vmem:[%s416 + $0x34] sm:$0xf]
        %v1850 = vld [vmem:[%s416 + $0x54] sm:$0xf]
        %v1851 = vld [vmem:[%s416 + $0x74] sm:$0xf]
        %v1852 = vld [vmem:[%s416 + $0x94] sm:$0xf]
        %v1853 = vld [vmem:[%s416 + $0xb4] sm:$0xf]
        %v1854 = vld [vmem:[%s416 + $0xd4] sm:$0xf]
        %v1855 = vld [vmem:[%s416 + $0xf4] sm:$0xf]
        %v1856 = vld [vmem:[%s416 + $0x114] sm:$0xf]
        %v1857 = vld [vmem:[%s416 + $0x134] sm:$0xf]
        %v1858 = vld [vmem:[%s416 + $0x154] sm:$0xf]
        %v1859 = vld [vmem:[%s416 + $0x174] sm:$0xf]
        %v1860 = vld [vmem:[%s416 + $0x194] sm:$0xf]
        %v1861 = vld [vmem:[%s416 + $0x1b4] sm:$0xf]
        %v1862 = vld [vmem:[%s416 + $0x1d4] sm:$0xf]
        %v1863 = vld [vmem:[%s416 + $0x1f4] sm:$0xf]
        %v1864 = vpack.c.bf16 %v1637, %v1637
        %v1881 = vunpack.c.l.b16 %v1848
        %v1882 = vunpack.c.l.b16 %v1849
        %v1883 = vunpack.c.l.b16 %v1850
        %v1884 = vunpack.c.l.b16 %v1851
        %v1885 = vunpack.c.l.b16 %v1852
        %v1886 = vunpack.c.l.b16 %v1853
        %v1887 = vunpack.c.l.b16 %v1854
        %v1888 = vunpack.c.l.b16 %v1855
        %v1889 = vunpack.c.l.b16 %v1856
        %v1890 = vunpack.c.l.b16 %v1857
        %v1891 = vunpack.c.l.b16 %v1858
        %v1892 = vunpack.c.l.b16 %v1859
        %v1893 = vunpack.c.l.b16 %v1860
        %v1894 = vunpack.c.l.b16 %v1861
        %v1895 = vunpack.c.l.b16 %v1862
        %v1896 = vunpack.c.l.b16 %v1863
        %v1897 = vpack.c.b16 %v1882, %v1881
        %v1898 = vpack.c.b16 %v1884, %v1883
        %v1899 = vpack.c.b16 %v1886, %v1885
        %v1900 = vpack.c.b16 %v1888, %v1887
        %v1901 = vpack.c.b16 %v1890, %v1889
        %v1902 = vpack.c.b16 %v1892, %v1891
        %v1903 = vpack.c.b16 %v1894, %v1893
        %v1904 = vpack.c.b16 %v1896, %v1895
        %1913 = vmatprep.subr.bf16.mxu0 0
        %1914 = vmatpush1.bf16.msra.mxu0 %v1897
        %1915 = vmatprep.subr.bf16.mxu0 0
        %1916 = vmatpush1.bf16.msra.mxu0 %v1898
        %1917 = vmatprep.subr.bf16.mxu0 0
        %1918 = vmatpush1.bf16.msra.mxu0 %v1899
        %1919 = vmatprep.subr.bf16.mxu0 0
        %1920 = vmatpush1.bf16.msra.mxu0 %v1900
        %1921 = vmatprep.subr.bf16.mxu0 0
        %1922 = vmatpush1.bf16.msra.mxu0 %v1901
        %1923 = vmatprep.subr.bf16.mxu0 0
        %1924 = vmatpush1.bf16.msra.mxu0 %v1902
        %1925 = vmatprep.subr.bf16.mxu0 0
        %1926 = vmatpush1.bf16.msra.mxu0 %v1903
        %1927 = vmatprep.subr.bf16.mxu0 0
        %1928 = vmatpush1.bf16.msra.mxu0 %v1904
        %1929 = vmatprep.subr.bf16.mxu0 0
        %1930 = vmatpush1.bf16.msra.mxu0 0
        %1931 = vmatprep.subr.bf16.mxu0 0
        %1932 = vmatpush1.bf16.msra.mxu0 0
        %1933 = vmatprep.subr.bf16.mxu0 0
        %1934 = vmatpush1.bf16.msra.mxu0 0
        %1935 = vmatprep.subr.bf16.mxu0 0
        %1936 = vmatpush1.bf16.msra.mxu0 0
        %1937 = vmatprep.subr.bf16.mxu0 0
        %1938 = vmatpush1.bf16.msra.mxu0 0
        %1939 = vmatprep.subr.bf16.mxu0 0
        %1940 = vmatpush1.bf16.msra.mxu0 0
        %1941 = vmatprep.subr.bf16.mxu0 0
        %1942 = vmatpush1.bf16.msra.mxu0 0
        %1943 = vmatprep.subr.bf16.mxu0 0
        %1944 = vmatpush1.bf16.msra.mxu0 0
        %1945 = vmatprep.mubr.bf16.mxu0 0
        %1946 = vmatmul.mubr.bf16.gmra.mrb[0].mxu0 %v1864
        %v1947 = vpop.f32.mrb[0].mxu0
        %v1948 = vadd.f32 0.0, %v1947
        %v1949 = vpop.f32.mrb[0].mxu0
        %v1950 = vpop.f32.mrb[0].mxu0
        %v1951 = vpop.f32.mrb[0].mxu0
        %1952 = vdwg.mxu0
        %v1953 = vadd.f32 %v1843, %v1948
        %v1954 = vld [vmem:[%s2 + $0x5] sm:$0x1]
        %v1956 = vlaneseq
        %v1957 = vshrl.u32 %v1956, 7
        %v1958 = vsub.s32 0, %v1957
        %v1959 = vrot.slane %v1954, %v1958
        %v1961 = vadd.f32 %v1953, %v1959
        %1962 = vst [vmem:[%s185 + $0x10] sm:$0xf] %v1961
        %v1963 = vld [vmem:[#allocation4] ss:$2 sm:$0x3]
        %s1964 = scalar_lea.vmem [#allocation4], 1
        %v1965 = vld [vmem:[%s1964] ss:$2 sm:$0x3]
        %s1966 = scalar_lea.vmem [#allocation4], 2
        %v1967 = vld [vmem:[%s1966] ss:$2 sm:$0x3]
        %v1968 = vld [vmem:[#allocation6 + $0x18] sm:$0xf]
        %v1969 = vld [vmem:[#allocation6 + $0x38] sm:$0xf]
        %v1970 = vld [vmem:[#allocation6 + $0x58] sm:$0xf]
        %v1971 = vld [vmem:[#allocation6 + $0x78] sm:$0xf]
        %v1972 = vld [vmem:[#allocation6 + $0x98] sm:$0xf]
        %v1973 = vld [vmem:[#allocation6 + $0xb8] sm:$0xf]
        %v1974 = vld [vmem:[#allocation6 + $0xd8] sm:$0xf]
        %v1975 = vld [vmem:[#allocation6 + $0xf8] sm:$0xf]
        %v1976 = vld [vmem:[#allocation6 + $0x118] sm:$0xf]
        %v1977 = vld [vmem:[#allocation6 + $0x138] sm:$0xf]
        %v1978 = vld [vmem:[#allocation6 + $0x158] sm:$0xf]
        %v1979 = vld [vmem:[#allocation6 + $0x178] sm:$0xf]
        %v1980 = vld [vmem:[#allocation6 + $0x198] sm:$0xf]
        %v1981 = vld [vmem:[#allocation6 + $0x1b8] sm:$0xf]
        %v1982 = vld [vmem:[#allocation6 + $0x1d8] sm:$0xf]
        %v1983 = vld [vmem:[#allocation6 + $0x1f8] sm:$0xf]
        %v1984 = vpack.c.bf16 %v1963, %v1963
        %v1985 = vld [vmem:[%s220 + $0x18] sm:$0xf]
        %v1986 = vld [vmem:[%s220 + $0x38] sm:$0xf]
        %v1987 = vld [vmem:[%s220 + $0x58] sm:$0xf]
        %v1988 = vld [vmem:[%s220 + $0x78] sm:$0xf]
        %v1989 = vld [vmem:[%s220 + $0x98] sm:$0xf]
        %v1990 = vld [vmem:[%s220 + $0xb8] sm:$0xf]
        %v1991 = vld [vmem:[%s220 + $0xd8] sm:$0xf]
        %v1992 = vld [vmem:[%s220 + $0xf8] sm:$0xf]
        %v1993 = vld [vmem:[%s220 + $0x118] sm:$0xf]
        %v1994 = vld [vmem:[%s220 + $0x138] sm:$0xf]
        %v1995 = vld [vmem:[%s220 + $0x158] sm:$0xf]
        %v1996 = vld [vmem:[%s220 + $0x178] sm:$0xf]
        %v1997 = vld [vmem:[%s220 + $0x198] sm:$0xf]
        %v1998 = vld [vmem:[%s220 + $0x1b8] sm:$0xf]
        %v1999 = vld [vmem:[%s220 + $0x1d8] sm:$0xf]
        %v2000 = vld [vmem:[%s220 + $0x1f8] sm:$0xf]
        %v2001 = vpack.c.bf16 %v1965, %v1965
        %v2018 = vunpack.c.l.b16 %v1985
        %v2019 = vunpack.c.l.b16 %v1986
        %v2020 = vunpack.c.l.b16 %v1987
        %v2021 = vunpack.c.l.b16 %v1988
        %v2022 = vunpack.c.l.b16 %v1989
        %v2023 = vunpack.c.l.b16 %v1990
        %v2024 = vunpack.c.l.b16 %v1991
        %v2025 = vunpack.c.l.b16 %v1992
        %v2026 = vunpack.c.l.b16 %v1993
        %v2027 = vunpack.c.l.b16 %v1994
        %v2028 = vunpack.c.l.b16 %v1995
        %v2029 = vunpack.c.l.b16 %v1996
        %v2030 = vunpack.c.l.b16 %v1997
        %v2031 = vunpack.c.l.b16 %v1998
        %v2032 = vunpack.c.l.b16 %v1999
        %v2033 = vunpack.c.l.b16 %v2000
        %v2034 = vpack.c.b16 %v2019, %v2018
        %v2035 = vpack.c.b16 %v2021, %v2020
        %v2036 = vpack.c.b16 %v2023, %v2022
        %v2037 = vpack.c.b16 %v2025, %v2024
        %v2038 = vpack.c.b16 %v2027, %v2026
        %v2039 = vpack.c.b16 %v2029, %v2028
        %v2040 = vpack.c.b16 %v2031, %v2030
        %v2041 = vpack.c.b16 %v2033, %v2032
        %2050 = vmatprep.subr.bf16.mxu0 0
        %2051 = vmatpush1.bf16.msra.mxu0 %v2034
        %2052 = vmatprep.subr.bf16.mxu0 0
        %2053 = vmatpush1.bf16.msra.mxu0 %v2035
        %2054 = vmatprep.subr.bf16.mxu0 0
        %2055 = vmatpush1.bf16.msra.mxu0 %v2036
        %2056 = vmatprep.subr.bf16.mxu0 0
        %2057 = vmatpush1.bf16.msra.mxu0 %v2037
        %2058 = vmatprep.subr.bf16.mxu0 0
        %2059 = vmatpush1.bf16.msra.mxu0 %v2038
        %2060 = vmatprep.subr.bf16.mxu0 0
        %2061 = vmatpush1.bf16.msra.mxu0 %v2039
        %2062 = vmatprep.subr.bf16.mxu0 0
        %2063 = vmatpush1.bf16.msra.mxu0 %v2040
        %2064 = vmatprep.subr.bf16.mxu0 0
        %2065 = vmatpush1.bf16.msra.mxu0 %v2041
        %2066 = vmatprep.subr.bf16.mxu0 0
        %2067 = vmatpush1.bf16.msra.mxu0 0
        %2068 = vmatprep.subr.bf16.mxu0 0
        %2069 = vmatpush1.bf16.msra.mxu0 0
        %2070 = vmatprep.subr.bf16.mxu0 0
        %2071 = vmatpush1.bf16.msra.mxu0 0
        %2072 = vmatprep.subr.bf16.mxu0 0
        %2073 = vmatpush1.bf16.msra.mxu0 0
        %2074 = vmatprep.subr.bf16.mxu0 0
        %2075 = vmatpush1.bf16.msra.mxu0 0
        %2076 = vmatprep.subr.bf16.mxu0 0
        %2077 = vmatpush1.bf16.msra.mxu0 0
        %2078 = vmatprep.subr.bf16.mxu0 0
        %2079 = vmatpush1.bf16.msra.mxu0 0
        %2080 = vmatprep.subr.bf16.mxu0 0
        %2081 = vmatpush1.bf16.msra.mxu0 0
        %2082 = vmatprep.mubr.bf16.mxu0 0
        %2083 = vmatmul.mubr.bf16.gmra.mrb[0].mxu0 %v2001
        %v2084 = vpop.f32.mrb[0].mxu0
        %v2085 = vadd.f32 0.0, %v2084
        %v2086 = vpop.f32.mrb[0].mxu0
        %v2087 = vpop.f32.mrb[0].mxu0
        %v2088 = vpop.f32.mrb[0].mxu0
        %2089 = vdwg.mxu0
        %v2106 = vunpack.c.l.b16 %v1968
        %v2107 = vunpack.c.l.b16 %v1969
        %v2108 = vunpack.c.l.b16 %v1970
        %v2109 = vunpack.c.l.b16 %v1971
        %v2110 = vunpack.c.l.b16 %v1972
        %v2111 = vunpack.c.l.b16 %v1973
        %v2112 = vunpack.c.l.b16 %v1974
        %v2113 = vunpack.c.l.b16 %v1975
        %v2114 = vunpack.c.l.b16 %v1976
        %v2115 = vunpack.c.l.b16 %v1977
        %v2116 = vunpack.c.l.b16 %v1978
        %v2117 = vunpack.c.l.b16 %v1979
        %v2118 = vunpack.c.l.b16 %v1980
        %v2119 = vunpack.c.l.b16 %v1981
        %v2120 = vunpack.c.l.b16 %v1982
        %v2121 = vunpack.c.l.b16 %v1983
        %v2122 = vpack.c.b16 %v2107, %v2106
        %v2123 = vpack.c.b16 %v2109, %v2108
        %v2124 = vpack.c.b16 %v2111, %v2110
        %v2125 = vpack.c.b16 %v2113, %v2112
        %v2126 = vpack.c.b16 %v2115, %v2114
        %v2127 = vpack.c.b16 %v2117, %v2116
        %v2128 = vpack.c.b16 %v2119, %v2118
        %v2129 = vpack.c.b16 %v2121, %v2120
        %2138 = vmatprep.subr.bf16.mxu0 0
        %2139 = vmatpush1.bf16.msra.mxu0 %v2122
        %2140 = vmatprep.subr.bf16.mxu0 0
        %2141 = vmatpush1.bf16.msra.mxu0 %v2123
        %2142 = vmatprep.subr.bf16.mxu0 0
        %2143 = vmatpush1.bf16.msra.mxu0 %v2124
        %2144 = vmatprep.subr.bf16.mxu0 0
        %2145 = vmatpush1.bf16.msra.mxu0 %v2125
        %2146 = vmatprep.subr.bf16.mxu0 0
        %2147 = vmatpush1.bf16.msra.mxu0 %v2126
        %2148 = vmatprep.subr.bf16.mxu0 0
        %2149 = vmatpush1.bf16.msra.mxu0 %v2127
        %2150 = vmatprep.subr.bf16.mxu0 0
        %2151 = vmatpush1.bf16.msra.mxu0 %v2128
        %2152 = vmatprep.subr.bf16.mxu0 0
        %2153 = vmatpush1.bf16.msra.mxu0 %v2129
        %2154 = vmatprep.subr.bf16.mxu0 0
        %2155 = vmatpush1.bf16.msra.mxu0 0
        %2156 = vmatprep.subr.bf16.mxu0 0
        %2157 = vmatpush1.bf16.msra.mxu0 0
        %2158 = vmatprep.subr.bf16.mxu0 0
        %2159 = vmatpush1.bf16.msra.mxu0 0
        %2160 = vmatprep.subr.bf16.mxu0 0
        %2161 = vmatpush1.bf16.msra.mxu0 0
        %2162 = vmatprep.subr.bf16.mxu0 0
        %2163 = vmatpush1.bf16.msra.mxu0 0
        %2164 = vmatprep.subr.bf16.mxu0 0
        %2165 = vmatpush1.bf16.msra.mxu0 0
        %2166 = vmatprep.subr.bf16.mxu0 0
        %2167 = vmatpush1.bf16.msra.mxu0 0
        %2168 = vmatprep.subr.bf16.mxu0 0
        %2169 = vmatpush1.bf16.msra.mxu0 0
        %2170 = vmatprep.mubr.bf16.mxu0 0
        %2171 = vmatmul.mubr.bf16.gmra.mrb[0].mxu0 %v1984
        %v2172 = vpop.f32.mrb[0].mxu0
        %v2173 = vadd.f32 %v2085, %v2172
        %v2174 = vpop.f32.mrb[0].mxu0
        %v2175 = vpop.f32.mrb[0].mxu0
        %v2176 = vpop.f32.mrb[0].mxu0
        %2177 = vdwg.mxu0
        %v2178 = vld [vmem:[%s416 + $0x18] sm:$0xf]
        %v2179 = vld [vmem:[%s416 + $0x38] sm:$0xf]
        %v2180 = vld [vmem:[%s416 + $0x58] sm:$0xf]
        %v2181 = vld [vmem:[%s416 + $0x78] sm:$0xf]
        %v2182 = vld [vmem:[%s416 + $0x98] sm:$0xf]
        %v2183 = vld [vmem:[%s416 + $0xb8] sm:$0xf]
        %v2184 = vld [vmem:[%s416 + $0xd8] sm:$0xf]
        %v2185 = vld [vmem:[%s416 + $0xf8] sm:$0xf]
        %v2186 = vld [vmem:[%s416 + $0x118] sm:$0xf]
        %v2187 = vld [vmem:[%s416 + $0x138] sm:$0xf]
        %v2188 = vld [vmem:[%s416 + $0x158] sm:$0xf]
        %v2189 = vld [vmem:[%s416 + $0x178] sm:$0xf]
        %v2190 = vld [vmem:[%s416 + $0x198] sm:$0xf]
        %v2191 = vld [vmem:[%s416 + $0x1b8] sm:$0xf]
        %v2192 = vld [vmem:[%s416 + $0x1d8] sm:$0xf]
        %v2193 = vld [vmem:[%s416 + $0x1f8] sm:$0xf]
        %v2194 = vpack.c.bf16 %v1967, %v1967
        %v2211 = vunpack.c.l.b16 %v2178
        %v2212 = vunpack.c.l.b16 %v2179
        %v2213 = vunpack.c.l.b16 %v2180
        %v2214 = vunpack.c.l.b16 %v2181
        %v2215 = vunpack.c.l.b16 %v2182
        %v2216 = vunpack.c.l.b16 %v2183
        %v2217 = vunpack.c.l.b16 %v2184
        %v2218 = vunpack.c.l.b16 %v2185
        %v2219 = vunpack.c.l.b16 %v2186
        %v2220 = vunpack.c.l.b16 %v2187
        %v2221 = vunpack.c.l.b16 %v2188
        %v2222 = vunpack.c.l.b16 %v2189
        %v2223 = vunpack.c.l.b16 %v2190
        %v2224 = vunpack.c.l.b16 %v2191
        %v2225 = vunpack.c.l.b16 %v2192
        %v2226 = vunpack.c.l.b16 %v2193
        %v2227 = vpack.c.b16 %v2212, %v2211
        %v2228 = vpack.c.b16 %v2214, %v2213
        %v2229 = vpack.c.b16 %v2216, %v2215
        %v2230 = vpack.c.b16 %v2218, %v2217
        %v2231 = vpack.c.b16 %v2220, %v2219
        %v2232 = vpack.c.b16 %v2222, %v2221
        %v2233 = vpack.c.b16 %v2224, %v2223
        %v2234 = vpack.c.b16 %v2226, %v2225
        %2243 = vmatprep.subr.bf16.mxu0 0
        %2244 = vmatpush1.bf16.msra.mxu0 %v2227
        %2245 = vmatprep.subr.bf16.mxu0 0
        %2246 = vmatpush1.bf16.msra.mxu0 %v2228
        %2247 = vmatprep.subr.bf16.mxu0 0
        %2248 = vmatpush1.bf16.msra.mxu0 %v2229
        %2249 = vmatprep.subr.bf16.mxu0 0
        %2250 = vmatpush1.bf16.msra.mxu0 %v2230
        %2251 = vmatprep.subr.bf16.mxu0 0
        %2252 = vmatpush1.bf16.msra.mxu0 %v2231
        %2253 = vmatprep.subr.bf16.mxu0 0
        %2254 = vmatpush1.bf16.msra.mxu0 %v2232
        %2255 = vmatprep.subr.bf16.mxu0 0
        %2256 = vmatpush1.bf16.msra.mxu0 %v2233
        %2257 = vmatprep.subr.bf16.mxu0 0
        %2258 = vmatpush1.bf16.msra.mxu0 %v2234
        %2259 = vmatprep.subr.bf16.mxu0 0
        %2260 = vmatpush1.bf16.msra.mxu0 0
        %2261 = vmatprep.subr.bf16.mxu0 0
        %2262 = vmatpush1.bf16.msra.mxu0 0
        %2263 = vmatprep.subr.bf16.mxu0 0
        %2264 = vmatpush1.bf16.msra.mxu0 0
        %2265 = vmatprep.subr.bf16.mxu0 0
        %2266 = vmatpush1.bf16.msra.mxu0 0
        %2267 = vmatprep.subr.bf16.mxu0 0
        %2268 = vmatpush1.bf16.msra.mxu0 0
        %2269 = vmatprep.subr.bf16.mxu0 0
        %2270 = vmatpush1.bf16.msra.mxu0 0
        %2271 = vmatprep.subr.bf16.mxu0 0
        %2272 = vmatpush1.bf16.msra.mxu0 0
        %2273 = vmatprep.subr.bf16.mxu0 0
        %2274 = vmatpush1.bf16.msra.mxu0 0
        %2275 = vmatprep.mubr.bf16.mxu0 0
        %2276 = vmatmul.mubr.bf16.gmra.mrb[0].mxu0 %v2194
        %v2277 = vpop.f32.mrb[0].mxu0
        %v2278 = vadd.f32 0.0, %v2277
        %v2279 = vpop.f32.mrb[0].mxu0
        %v2280 = vpop.f32.mrb[0].mxu0
        %v2281 = vpop.f32.mrb[0].mxu0
        %2282 = vdwg.mxu0
        %v2283 = vadd.f32 %v2173, %v2278
        %v2284 = vld [vmem:[%s2 + $0x6] sm:$0x1]
        %v2286 = vlaneseq
        %v2287 = vshrl.u32 %v2286, 7
        %v2288 = vsub.s32 0, %v2287
        %v2289 = vrot.slane %v2284, %v2288
        %v2291 = vadd.f32 %v2283, %v2289
        %v2292 = vmax.f32 %v2291, 0.0
        %2293 = vst [vmem:[#allocation5 + $0x1] sm:$0x3] %v2292
        %v2294 = vld [vmem:[#allocation5] sm:$0x3]
        %v2295 = vld [vmem:[#allocation5 + $0x1] sm:$0x3]
        %v2296 = vld [vmem:[#allocation5 + $0x2] sm:$0x3]
        %v2297 = vld [vmem:[#allocation6 + $0x1c] sm:$0xf]
        %v2298 = vld [vmem:[#allocation6 + $0x3c] sm:$0xf]
        %v2299 = vld [vmem:[#allocation6 + $0x5c] sm:$0xf]
        %v2300 = vld [vmem:[#allocation6 + $0x7c] sm:$0xf]
        %v2301 = vld [vmem:[#allocation6 + $0x9c] sm:$0xf]
        %v2302 = vld [vmem:[#allocation6 + $0xbc] sm:$0xf]
        %v2303 = vld [vmem:[#allocation6 + $0xdc] sm:$0xf]
        %v2304 = vld [vmem:[#allocation6 + $0xfc] sm:$0xf]
        %v2305 = vld [vmem:[#allocation6 + $0x11c] sm:$0xf]
        %v2306 = vld [vmem:[#allocation6 + $0x13c] sm:$0xf]
        %v2307 = vld [vmem:[#allocation6 + $0x15c] sm:$0xf]
        %v2308 = vld [vmem:[#allocation6 + $0x17c] sm:$0xf]
        %v2309 = vld [vmem:[#allocation6 + $0x19c] sm:$0xf]
        %v2310 = vld [vmem:[#allocation6 + $0x1bc] sm:$0xf]
        %v2311 = vld [vmem:[#allocation6 + $0x1dc] sm:$0xf]
        %v2312 = vld [vmem:[#allocation6 + $0x1fc] sm:$0xf]
        %v2313 = vpack.c.bf16 %v2294, %v2294
        %v2314 = vld [vmem:[%s220 + $0x1c] sm:$0xf]
        %v2315 = vld [vmem:[%s220 + $0x3c] sm:$0xf]
        %v2316 = vld [vmem:[%s220 + $0x5c] sm:$0xf]
        %v2317 = vld [vmem:[%s220 + $0x7c] sm:$0xf]
        %v2318 = vld [vmem:[%s220 + $0x9c] sm:$0xf]
        %v2319 = vld [vmem:[%s220 + $0xbc] sm:$0xf]
        %v2320 = vld [vmem:[%s220 + $0xdc] sm:$0xf]
        %v2321 = vld [vmem:[%s220 + $0xfc] sm:$0xf]
        %v2322 = vld [vmem:[%s220 + $0x11c] sm:$0xf]
        %v2323 = vld [vmem:[%s220 + $0x13c] sm:$0xf]
        %v2324 = vld [vmem:[%s220 + $0x15c] sm:$0xf]
        %v2325 = vld [vmem:[%s220 + $0x17c] sm:$0xf]
        %v2326 = vld [vmem:[%s220 + $0x19c] sm:$0xf]
        %v2327 = vld [vmem:[%s220 + $0x1bc] sm:$0xf]
        %v2328 = vld [vmem:[%s220 + $0x1dc] sm:$0xf]
        %v2329 = vld [vmem:[%s220 + $0x1fc] sm:$0xf]
        %v2330 = vpack.c.bf16 %v2295, %v2295
        %v2347 = vunpack.c.l.b16 %v2314
        %v2348 = vunpack.c.l.b16 %v2315
        %v2349 = vunpack.c.l.b16 %v2316
        %v2350 = vunpack.c.l.b16 %v2317
        %v2351 = vunpack.c.l.b16 %v2318
        %v2352 = vunpack.c.l.b16 %v2319
        %v2353 = vunpack.c.l.b16 %v2320
        %v2354 = vunpack.c.l.b16 %v2321
        %v2355 = vunpack.c.l.b16 %v2322
        %v2356 = vunpack.c.l.b16 %v2323
        %v2357 = vunpack.c.l.b16 %v2324
        %v2358 = vunpack.c.l.b16 %v2325
        %v2359 = vunpack.c.l.b16 %v2326
        %v2360 = vunpack.c.l.b16 %v2327
        %v2361 = vunpack.c.l.b16 %v2328
        %v2362 = vunpack.c.l.b16 %v2329
        %v2363 = vpack.c.b16 %v2348, %v2347
        %v2364 = vpack.c.b16 %v2350, %v2349
        %v2365 = vpack.c.b16 %v2352, %v2351
        %v2366 = vpack.c.b16 %v2354, %v2353
        %v2367 = vpack.c.b16 %v2356, %v2355
        %v2368 = vpack.c.b16 %v2358, %v2357
        %v2369 = vpack.c.b16 %v2360, %v2359
        %v2370 = vpack.c.b16 %v2362, %v2361
        %2379 = vmatprep.subr.bf16.mxu0 0
        %2380 = vmatpush1.bf16.msra.mxu0 %v2363
        %2381 = vmatprep.subr.bf16.mxu0 0
        %2382 = vmatpush1.bf16.msra.mxu0 %v2364
        %2383 = vmatprep.subr.bf16.mxu0 0
        %2384 = vmatpush1.bf16.msra.mxu0 %v2365
        %2385 = vmatprep.subr.bf16.mxu0 0
        %2386 = vmatpush1.bf16.msra.mxu0 %v2366
        %2387 = vmatprep.subr.bf16.mxu0 0
        %2388 = vmatpush1.bf16.msra.mxu0 %v2367
        %2389 = vmatprep.subr.bf16.mxu0 0
        %2390 = vmatpush1.bf16.msra.mxu0 %v2368
        %2391 = vmatprep.subr.bf16.mxu0 0
        %2392 = vmatpush1.bf16.msra.mxu0 %v2369
        %2393 = vmatprep.subr.bf16.mxu0 0
        %2394 = vmatpush1.bf16.msra.mxu0 %v2370
        %2395 = vmatprep.subr.bf16.mxu0 0
        %2396 = vmatpush1.bf16.msra.mxu0 0
        %2397 = vmatprep.subr.bf16.mxu0 0
        %2398 = vmatpush1.bf16.msra.mxu0 0
        %2399 = vmatprep.subr.bf16.mxu0 0
        %2400 = vmatpush1.bf16.msra.mxu0 0
        %2401 = vmatprep.subr.bf16.mxu0 0
        %2402 = vmatpush1.bf16.msra.mxu0 0
        %2403 = vmatprep.subr.bf16.mxu0 0
        %2404 = vmatpush1.bf16.msra.mxu0 0
        %2405 = vmatprep.subr.bf16.mxu0 0
        %2406 = vmatpush1.bf16.msra.mxu0 0
        %2407 = vmatprep.subr.bf16.mxu0 0
        %2408 = vmatpush1.bf16.msra.mxu0 0
        %2409 = vmatprep.subr.bf16.mxu0 0
        %2410 = vmatpush1.bf16.msra.mxu0 0
        %2411 = vmatprep.mubr.bf16.mxu0 0
        %2412 = vmatmul.mubr.bf16.gmra.mrb[0].mxu0 %v2330
        %v2413 = vpop.f32.mrb[0].mxu0
        %v2414 = vadd.f32 0.0, %v2413
        %v2415 = vpop.f32.mrb[0].mxu0
        %v2416 = vpop.f32.mrb[0].mxu0
        %v2417 = vpop.f32.mrb[0].mxu0
        %2418 = vdwg.mxu0
        %v2435 = vunpack.c.l.b16 %v2297
        %v2436 = vunpack.c.l.b16 %v2298
        %v2437 = vunpack.c.l.b16 %v2299
        %v2438 = vunpack.c.l.b16 %v2300
        %v2439 = vunpack.c.l.b16 %v2301
        %v2440 = vunpack.c.l.b16 %v2302
        %v2441 = vunpack.c.l.b16 %v2303
        %v2442 = vunpack.c.l.b16 %v2304
        %v2443 = vunpack.c.l.b16 %v2305
        %v2444 = vunpack.c.l.b16 %v2306
        %v2445 = vunpack.c.l.b16 %v2307
        %v2446 = vunpack.c.l.b16 %v2308
        %v2447 = vunpack.c.l.b16 %v2309
        %v2448 = vunpack.c.l.b16 %v2310
        %v2449 = vunpack.c.l.b16 %v2311
        %v2450 = vunpack.c.l.b16 %v2312
        %v2451 = vpack.c.b16 %v2436, %v2435
        %v2452 = vpack.c.b16 %v2438, %v2437
        %v2453 = vpack.c.b16 %v2440, %v2439
        %v2454 = vpack.c.b16 %v2442, %v2441
        %v2455 = vpack.c.b16 %v2444, %v2443
        %v2456 = vpack.c.b16 %v2446, %v2445
        %v2457 = vpack.c.b16 %v2448, %v2447
        %v2458 = vpack.c.b16 %v2450, %v2449
        %2467 = vmatprep.subr.bf16.mxu0 0
        %2468 = vmatpush1.bf16.msra.mxu0 %v2451
        %2469 = vmatprep.subr.bf16.mxu0 0
        %2470 = vmatpush1.bf16.msra.mxu0 %v2452
        %2471 = vmatprep.subr.bf16.mxu0 0
        %2472 = vmatpush1.bf16.msra.mxu0 %v2453
        %2473 = vmatprep.subr.bf16.mxu0 0
        %2474 = vmatpush1.bf16.msra.mxu0 %v2454
        %2475 = vmatprep.subr.bf16.mxu0 0
        %2476 = vmatpush1.bf16.msra.mxu0 %v2455
        %2477 = vmatprep.subr.bf16.mxu0 0
        %2478 = vmatpush1.bf16.msra.mxu0 %v2456
        %2479 = vmatprep.subr.bf16.mxu0 0
        %2480 = vmatpush1.bf16.msra.mxu0 %v2457
        %2481 = vmatprep.subr.bf16.mxu0 0
        %2482 = vmatpush1.bf16.msra.mxu0 %v2458
        %2483 = vmatprep.subr.bf16.mxu0 0
        %2484 = vmatpush1.bf16.msra.mxu0 0
        %2485 = vmatprep.subr.bf16.mxu0 0
        %2486 = vmatpush1.bf16.msra.mxu0 0
        %2487 = vmatprep.subr.bf16.mxu0 0
        %2488 = vmatpush1.bf16.msra.mxu0 0
        %2489 = vmatprep.subr.bf16.mxu0 0
        %2490 = vmatpush1.bf16.msra.mxu0 0
        %2491 = vmatprep.subr.bf16.mxu0 0
        %2492 = vmatpush1.bf16.msra.mxu0 0
        %2493 = vmatprep.subr.bf16.mxu0 0
        %2494 = vmatpush1.bf16.msra.mxu0 0
        %2495 = vmatprep.subr.bf16.mxu0 0
        %2496 = vmatpush1.bf16.msra.mxu0 0
        %2497 = vmatprep.subr.bf16.mxu0 0
        %2498 = vmatpush1.bf16.msra.mxu0 0
        %2499 = vmatprep.mubr.bf16.mxu0 0
        %2500 = vmatmul.mubr.bf16.gmra.mrb[0].mxu0 %v2313
        %v2501 = vpop.f32.mrb[0].mxu0
        %v2502 = vadd.f32 %v2414, %v2501
        %v2503 = vpop.f32.mrb[0].mxu0
        %v2504 = vpop.f32.mrb[0].mxu0
        %v2505 = vpop.f32.mrb[0].mxu0
        %2506 = vdwg.mxu0
        %v2507 = vld [vmem:[%s416 + $0x1c] sm:$0xf]
        %v2508 = vld [vmem:[%s416 + $0x3c] sm:$0xf]
        %v2509 = vld [vmem:[%s416 + $0x5c] sm:$0xf]
        %v2510 = vld [vmem:[%s416 + $0x7c] sm:$0xf]
        %v2511 = vld [vmem:[%s416 + $0x9c] sm:$0xf]
        %v2512 = vld [vmem:[%s416 + $0xbc] sm:$0xf]
        %v2513 = vld [vmem:[%s416 + $0xdc] sm:$0xf]
        %v2514 = vld [vmem:[%s416 + $0xfc] sm:$0xf]
        %v2515 = vld [vmem:[%s416 + $0x11c] sm:$0xf]
        %v2516 = vld [vmem:[%s416 + $0x13c] sm:$0xf]
        %v2517 = vld [vmem:[%s416 + $0x15c] sm:$0xf]
        %v2518 = vld [vmem:[%s416 + $0x17c] sm:$0xf]
        %v2519 = vld [vmem:[%s416 + $0x19c] sm:$0xf]
        %v2520 = vld [vmem:[%s416 + $0x1bc] sm:$0xf]
        %v2521 = vld [vmem:[%s416 + $0x1dc] sm:$0xf]
        %v2522 = vld [vmem:[%s416 + $0x1fc] sm:$0xf]
        %v2523 = vpack.c.bf16 %v2296, %v2296
        %v2540 = vunpack.c.l.b16 %v2507
        %v2541 = vunpack.c.l.b16 %v2508
        %v2542 = vunpack.c.l.b16 %v2509
        %v2543 = vunpack.c.l.b16 %v2510
        %v2544 = vunpack.c.l.b16 %v2511
        %v2545 = vunpack.c.l.b16 %v2512
        %v2546 = vunpack.c.l.b16 %v2513
        %v2547 = vunpack.c.l.b16 %v2514
        %v2548 = vunpack.c.l.b16 %v2515
        %v2549 = vunpack.c.l.b16 %v2516
        %v2550 = vunpack.c.l.b16 %v2517
        %v2551 = vunpack.c.l.b16 %v2518
        %v2552 = vunpack.c.l.b16 %v2519
        %v2553 = vunpack.c.l.b16 %v2520
        %v2554 = vunpack.c.l.b16 %v2521
        %v2555 = vunpack.c.l.b16 %v2522
        %v2556 = vpack.c.b16 %v2541, %v2540
        %v2557 = vpack.c.b16 %v2543, %v2542
        %v2558 = vpack.c.b16 %v2545, %v2544
        %v2559 = vpack.c.b16 %v2547, %v2546
        %v2560 = vpack.c.b16 %v2549, %v2548
        %v2561 = vpack.c.b16 %v2551, %v2550
        %v2562 = vpack.c.b16 %v2553, %v2552
        %v2563 = vpack.c.b16 %v2555, %v2554
        %2572 = vmatprep.subr.bf16.mxu0 0
        %2573 = vmatpush1.bf16.msra.mxu0 %v2556
        %2574 = vmatprep.subr.bf16.mxu0 0
        %2575 = vmatpush1.bf16.msra.mxu0 %v2557
        %2576 = vmatprep.subr.bf16.mxu0 0
        %2577 = vmatpush1.bf16.msra.mxu0 %v2558
        %2578 = vmatprep.subr.bf16.mxu0 0
        %2579 = vmatpush1.bf16.msra.mxu0 %v2559
        %2580 = vmatprep.subr.bf16.mxu0 0
        %2581 = vmatpush1.bf16.msra.mxu0 %v2560
        %2582 = vmatprep.subr.bf16.mxu0 0
        %2583 = vmatpush1.bf16.msra.mxu0 %v2561
        %2584 = vmatprep.subr.bf16.mxu0 0
        %2585 = vmatpush1.bf16.msra.mxu0 %v2562
        %2586 = vmatprep.subr.bf16.mxu0 0
        %2587 = vmatpush1.bf16.msra.mxu0 %v2563
        %2588 = vmatprep.subr.bf16.mxu0 0
        %2589 = vmatpush1.bf16.msra.mxu0 0
        %2590 = vmatprep.subr.bf16.mxu0 0
        %2591 = vmatpush1.bf16.msra.mxu0 0
        %2592 = vmatprep.subr.bf16.mxu0 0
        %2593 = vmatpush1.bf16.msra.mxu0 0
        %2594 = vmatprep.subr.bf16.mxu0 0
        %2595 = vmatpush1.bf16.msra.mxu0 0
        %2596 = vmatprep.subr.bf16.mxu0 0
        %2597 = vmatpush1.bf16.msra.mxu0 0
        %2598 = vmatprep.subr.bf16.mxu0 0
        %2599 = vmatpush1.bf16.msra.mxu0 0
        %2600 = vmatprep.subr.bf16.mxu0 0
        %2601 = vmatpush1.bf16.msra.mxu0 0
        %2602 = vmatprep.subr.bf16.mxu0 0
        %2603 = vmatpush1.bf16.msra.mxu0 0
        %2604 = vmatprep.mubr.bf16.mxu0 0
        %2605 = vmatmul.mubr.bf16.gmra.mrb[0].mxu0 %v2523
        %v2606 = vpop.f32.mrb[0].mxu0
        %v2607 = vadd.f32 0.0, %v2606
        %v2608 = vpop.f32.mrb[0].mxu0
        %v2609 = vpop.f32.mrb[0].mxu0
        %v2610 = vpop.f32.mrb[0].mxu0
        %2611 = vdwg.mxu0
        %v2612 = vadd.f32 %v2502, %v2607
        %v2613 = vld [vmem:[%s2 + $0x7] sm:$0x1]
        %v2615 = vlaneseq
        %v2616 = vshrl.u32 %v2615, 7
        %v2617 = vsub.s32 0, %v2616
        %v2618 = vrot.slane %v2613, %v2617
        %v2620 = vadd.f32 %v2612, %v2618
        %v2622 = vrot.slane %v2620, 4
        %2624 = vst [vmem:[%s185 + $0x10] sm:$0x30] %v2622
        %p2625 = scmp.lt.s32.totalorder %s15, 1
        %s2626 = scalar_select %p2625, %s15, 1
        %s2627 = smul.addr %s2626, 4
        %s2628 = smul.addr %s2627, 8
        %s2629 = scalar_lea.vmem %s3, %s2628
        // Predicated region
        $region37: #{ssd_forward.1} parent=31 // pred_check
          %p2630 = pneg %p101
        $region38: #{ssd_forward.1} parent=31 // pred_check_branch
          %2632 = sbr.rel (%p2630) target = $region40
        $region39: #{ssd_forward.1} parent=31 // pred_region
          _
        $region40: #{ssd_forward.1} parent=31 // pred_fallthru
          _
      $region32: #{ssd_forward.1} parent=5 // pred_fallthru
        _
      %p2633 = scmp.le.s32.totalorder 2, %s10
      // Predicated region
      $region41: #{ssd_forward.1} parent=5 // pred_check
        %p2634 = pneg %p2633
      $region42: #{ssd_forward.1} parent=5 // pred_check_branch
        %2636 = sbr.rel (%p2634) target = $region44
      $region43: #{ssd_forward.1} parent=5 // pred_region
        %s2637 = ssub.s32 %s10, 2
        // Predicated region
        $region45: #{ssd_forward.1} parent=43 // pred_check
          %p2638 = pneg %p107
        $region46: #{ssd_forward.1} parent=43 // pred_check_branch
          %2640 = sbr.rel (%p2638) target = $region48
        $region47: #{ssd_forward.1} parent=43 // pred_region
          %p2641 = scmp.lt.s32.totalorder %s16, 1
          %s2642 = scalar_select %p2641, %s16, 1
          %s2643 = smul.addr %s2642, 4
          %s2644 = smul.addr %s2643, 8
          %s2645 = scalar_lea.vmem %s3, %s2644
        $region48: #{ssd_forward.1} parent=43 // pred_fallthru
          _
      $region44: #{ssd_forward.1} parent=5 // pred_fallthru
        _
    $region6: #{ssd_forward.1} parent=1 // loop_footer
      %s14 = sadd.s32 1, %s10
    $region7: #{ssd_forward.1} parent=1 // loop_footer_branch
      %9 = sbr.rel target = $region3
    $region8: #{ssd_forward.1} parent=1 // loop_exit
      _
    %2646 = vsyncpa [#allocation7], 1
    %s2647 = scalar_lea.sflag [#allocation7], 1
    %2648 = vsyncpa %s2647, 1

</llo_original>
